<compile_context>
chip_gen: v7x
topology: tpu7x:2x2x1
jax: 0.10.0
libtpu: 0.0.40
codegen_flags: <defaults>
</compile_context>

<pallas_src>
import jax
import jax.numpy as jnp
from jax.experimental import pallas as pl
from jax.experimental.pallas import tpu as pltpu


# --------------------------------------------------------------------------
# Pallas kernel: fused im2col-matmul conv + bias + activation (one layer)
# --------------------------------------------------------------------------
def _make_conv_kernel(negative_slope=0.2, sigmoid=False):
    def kernel(p_ref, w_ref, b_ref, o_ref):
        # p_ref: (1, K, tS)   bf16 im2col patches (K = 9*Cin, tS = spatial tile)
        # w_ref: (Cout, K)    bf16 BN-folded conv weights (im2col layout)
        # b_ref: (Cout, 1)    f32  BN-folded bias
        # o_ref: (1, Cout, tS)
        acc = jnp.dot(w_ref[...], p_ref[0],
                      preferred_element_type=jnp.float32)     # single MXU matmul, f32 acc
        acc = acc + b_ref[...]                                 # broadcast over lanes
        if sigmoid:
            out = 1.0 / (1.0 + jnp.exp(-acc))                  # EUP exp
        else:
            out = jnp.where(acc > 0.0, acc, negative_slope * acc)   # LeakyReLU(0.2)
        o_ref[0] = out.astype(o_ref.dtype)
    return kernel


# --------------------------------------------------------------------------
# Wrapper glue
# --------------------------------------------------------------------------
def _pick_spatial_tile(s, cap=2048):
    """Largest 128-multiple divisor of s that is <= cap (else the full s)."""
    if s <= cap:
        return s
    t = cap - (cap % 128)
    while t >= 128:
        if s % t == 0:
            return t
        t -= 128
    return s


def _im2col_3x3(x, stride):
    """x: (N, C, H, W). Zero-pad 1 px and extract 3x3/stride taps.

    Returns (patches, Hout, Wout) with patches of shape (N, 9*C, Hout*Wout);
    the K index is (ky*3 + kx)*C + c, matching _fold_params' weight layout.
    """
    n, c, h, w = x.shape
    hout = (h + 2 - 3) // stride + 1
    wout = (w + 2 - 3) // stride + 1
    xp = jnp.pad(x, ((0, 0), (0, 0), (1, 1), (1, 1)))
    taps = []
    for ky in range(3):
        for kx in range(3):
            taps.append(
                xp[:, :,
                   ky:ky + stride * (hout - 1) + 1:stride,
                   kx:kx + stride * (wout - 1) + 1:stride])
    p = jnp.concatenate(taps, axis=1)                 # (N, 9*C, Hout, Wout)
    return p.reshape(n, 9 * c, hout * wout), hout, wout


def _conv_layer(x, w_mat, bias, *, stride, sigmoid, out_dtype):
    """One fused conv(+folded BN)+activation layer via a single pallas_call."""
    n = x.shape[0]
    cout, k = w_mat.shape
    patches, hout, wout = _im2col_3x3(x, stride)
    patches = patches.astype(jnp.bfloat16)            # bf16 MXU inputs
    s = hout * wout
    ts = _pick_spatial_tile(s)

    out = pl.pallas_call(
        _make_conv_kernel(sigmoid=sigmoid),
        out_shape=jax.ShapeDtypeStruct((n, cout, s), out_dtype),
        grid=(n, s // ts),
        in_specs=[
            pl.BlockSpec((1, k, ts), lambda i, j: (i, 0, j)),
            pl.BlockSpec((cout, k), lambda i, j: (0, 0)),
            pl.BlockSpec((cout, 1), lambda i, j: (0, 0)),
        ],
        out_specs=pl.BlockSpec((1, cout, ts), lambda i, j: (i, 0, j)),
        compiler_params=pltpu.CompilerParams(
            dimension_semantics=("parallel", "parallel"),
            vmem_limit_bytes=32 * 1024 * 1024,
        ),
    )(patches, w_mat, bias)
    return out.reshape(n, cout, hout, wout)            # free row-major reshape


def _fold_params(raw, eps=1e-5):
    """Fold eval-mode BatchNorm into conv weight+bias; im2col-reshape weights
    to (Cout, 9*Cin) and cast to bf16 once."""
    def prep(w, gamma=None, beta=None, mean=None, var=None):
        cout, cin = w.shape[0], w.shape[1]
        if gamma is not None:
            scale = gamma / jnp.sqrt(var + eps)
            w = w * scale[:, None, None, None]
            b = beta - mean * scale
        else:
            b = jnp.zeros((cout,), jnp.float32)
        w_mat = jnp.transpose(w, (0, 2, 3, 1)).reshape(cout, 9 * cin)
        return w_mat.astype(jnp.bfloat16), b.astype(jnp.float32).reshape(cout, 1)

    p = {}
    p["w1"], p["b1"] = prep(raw["w1"])
    p["w2"], p["b2"] = prep(raw["w2"], raw["g2"], raw["be2"], raw["m2"], raw["v2"])
    p["w3"], p["b3"] = prep(raw["w3"], raw["g3"], raw["be3"], raw["m3"], raw["v3"])
    p["w4"], p["b4"] = prep(raw["w4"], raw["g4"], raw["be4"], raw["m4"], raw["v4"])
    p["w5"], p["b5"] = prep(raw["w5"])
    return p


def discriminator_forward(x, params):
    """x: (N, 1, H, W) float32 -> (N, 1, H//16, W//16) float32."""
    h = x.astype(jnp.bfloat16)
    h = _conv_layer(h, params["w1"], params["b1"], stride=2, sigmoid=False,
                    out_dtype=jnp.bfloat16)
    h = _conv_layer(h, params["w2"], params["b2"], stride=2, sigmoid=False,
                    out_dtype=jnp.bfloat16)
    h = _conv_layer(h, params["w3"], params["b3"], stride=2, sigmoid=False,
                    out_dtype=jnp.bfloat16)
    h = _conv_layer(h, params["w4"], params["b4"], stride=2, sigmoid=False,
                    out_dtype=jnp.bfloat16)
    h = _conv_layer(h, params["w5"], params["b5"], stride=1, sigmoid=True,
                    out_dtype=jnp.float32)
    return h


# --------------------------------------------------------------------------
# Pure-JAX f32 reference (PyTorch semantics, eval-mode BN) for a sanity check
# --------------------------------------------------------------------------
def _reference(x, raw, eps=1e-5):
    def conv(h, w, stride):
        return jax.lax.conv_general_dilated(
            h, w, window_strides=(stride, stride), padding=((1, 1), (1, 1)),
            dimension_numbers=("NCHW", "OIHW", "NCHW"))

    def bn(h, g, b, m, v):
        return (h - m[None, :, None, None]) * (
            g[None, :, None, None] / jnp.sqrt(v[None, :, None, None] + eps)
        ) + b[None, :, None, None]

    def lrelu(h):
        return jnp.where(h > 0, h, 0.2 * h)

    h = lrelu(conv(x, raw["w1"], 2))
    h = lrelu(bn(conv(h, raw["w2"], 2), raw["g2"], raw["be2"], raw["m2"], raw["v2"]))
    h = lrelu(bn(conv(h, raw["w3"], 2), raw["g3"], raw["be3"], raw["m3"], raw["v3"]))
    h = lrelu(bn(conv(h, raw["w4"], 2), raw["g4"], raw["be4"], raw["m4"], raw["v4"]))
    h = conv(h, raw["w5"], 1)
    return jax.nn.sigmoid(h)


if __name__ == "__main__":
    key = jax.random.PRNGKey(0)
    keys = jax.random.split(key, 9)

    # NOTE: the module's first conv takes 1 input channel (the docstring's "2"
    # is inconsistent with Conv2d(1, 8, ...)), so the example uses 1 channel.
    N, Cin, H, W = 2, 1, 32, 32          # occ_map_size = 32 -> output (2,1,2,2)
    x = jax.random.normal(keys[0], (N, Cin, H, W), dtype=jnp.float32)

    def wgt(k, cout, cin):
        return 0.1 * jax.random.normal(k, (cout, cin, 3, 3), dtype=jnp.float32)

    def bn_params(k, c):
        k1, k2, k3, k4 = jax.random.split(k, 4)
        return (1.0 + 0.1 * jax.random.normal(k1, (c,), jnp.float32),
                0.1 * jax.random.normal(k2, (c,), jnp.float32),
                0.1 * jax.random.normal(k3, (c,), jnp.float32),
                jax.random.uniform(k4, (c,), jnp.float32, minval=0.5, maxval=1.5))

    raw = {
        "w1": wgt(keys[1], 8, 1),
        "w2": wgt(keys[2], 16, 8),
        "w3": wgt(keys[3], 32, 16),
        "w4": wgt(keys[4], 8, 32),
        "w5": wgt(keys[5], 1, 8),
    }
    raw["g2"], raw["be2"], raw["m2"], raw["v2"] = bn_params(keys[6], 16)
    raw["g3"], raw["be3"], raw["m3"], raw["v3"] = bn_params(keys[7], 32)
    raw["g4"], raw["be4"], raw["m4"], raw["v4"] = bn_params(keys[8], 8)

    params = _fold_params(raw)

    fwd = jax.jit(discriminator_forward)
    out = jax.block_until_ready(fwd(x, params))
    ref = jax.block_until_ready(_reference(x, raw))

    assert out.shape == (N, 1, H // 16, W // 16), out.shape
    max_err = float(jnp.max(jnp.abs(out - ref)))
    assert jnp.allclose(out, ref, atol=2e-2, rtol=2e-2), max_err

    print("KERNEL_OK")
</pallas_src>

<mosaic_0001>
module attributes {stable_mosaic.version = 11 : i64} {
  func.func @kernel(%arg0: i32, %arg1: i32, %arg2: memref<1x9x256xbf16, #tpu.memory_space<vmem>>, %arg3: memref<8x9xbf16, #tpu.memory_space<vmem>>, %arg4: memref<8x1xf32, #tpu.memory_space<vmem>>, %arg5: memref<1x8x256xbf16, #tpu.memory_space<vmem>>) attributes {dimension_semantics = [#tpu.dimension_semantics<parallel>, #tpu.dimension_semantics<parallel>], iteration_bounds = array<i64: 2, 1>, scalar_prefetch = 0 : i64, scratch_operands = 0 : i64, tpu.core_type = #tpu.core_type<tc>, window_params = [{transform_indices = @transform_0, window_bounds = array<i64: 1, 9, 256>}, {pipeline_mode = #tpu.pipeline_mode<synchronous>, transform_indices = @transform_1, window_bounds = array<i64: 8, 9>}, {pipeline_mode = #tpu.pipeline_mode<synchronous>, transform_indices = @transform_2, window_bounds = array<i64: 8, 1>}, {transform_indices = @transform_3, window_bounds = array<i64: 1, 8, 256>}]} {
    %c0 = arith.constant 0 : index
    %c0_0 = arith.constant 0 : index
    %0 = vector.load %arg3[%c0, %c0_0] : memref<8x9xbf16, #tpu.memory_space<vmem>>, vector<8x9xbf16>
    %c0_1 = arith.constant 0 : index
    %c0_2 = arith.constant 0 : index
    %c0_3 = arith.constant 0 : index
    %1 = vector.load %arg2[%c0_1, %c0_2, %c0_3] : memref<1x9x256xbf16, #tpu.memory_space<vmem>>, vector<1x9x256xbf16>
    %2 = vector.shape_cast %1 : vector<1x9x256xbf16> to vector<9x256xbf16>
    %cst = arith.constant dense<0.000000e+00> : vector<8x256xf32>
    %3 = tpu.matmul %0, %2, %cst {dimension_numbers = #tpu.dot_dimension_numbers<[1], [0], [0], [1], [0, 0, 1, 1], [], []>} : vector<8x9xbf16>, vector<9x256xbf16>, vector<8x256xf32> -> vector<8x256xf32>
    %c0_4 = arith.constant 0 : index
    %c0_5 = arith.constant 0 : index
    %4 = vector.load %arg4[%c0_4, %c0_5] : memref<8x1xf32, #tpu.memory_space<vmem>>, vector<8x1xf32>
    %5 = vector.broadcast %4 : vector<8x1xf32> to vector<8x256xf32>
    %6 = arith.addf %3, %5 : vector<8x256xf32>
    %cst_6 = arith.constant 0.000000e+00 : f32
    %7 = vector.broadcast %cst_6 : f32 to vector<8x256xf32>
    %8 = arith.cmpf ogt, %6, %7 : vector<8x256xf32>
    %cst_7 = arith.constant 2.000000e-01 : f32
    %9 = vector.broadcast %cst_7 : f32 to vector<8x256xf32>
    %10 = arith.mulf %9, %6 : vector<8x256xf32>
    %11 = arith.select %8, %6, %10 : vector<8x256xi1>, vector<8x256xf32>
    %12 = arith.truncf %11 : vector<8x256xf32> to vector<8x256xbf16>
    %c0_8 = arith.constant 0 : index
    %c0_9 = arith.constant 0 : index
    %c0_10 = arith.constant 0 : index
    %13 = vector.load %arg5[%c0_8, %c0_9, %c0_10] : memref<1x8x256xbf16, #tpu.memory_space<vmem>>, vector<1x8x256xbf16>
    %14 = vector.shape_cast %13 : vector<1x8x256xbf16> to vector<8x256xbf16>
    %15 = vector.shape_cast %12 : vector<8x256xbf16> to vector<1x8x256xbf16>
    tpu.vector_store %arg5[%c0_8, %c0_9, %c0_10], %15 {strides = array<i32>} : memref<1x8x256xbf16, #tpu.memory_space<vmem>>, vector<1x8x256xbf16>,
    return
  }
  func.func @transform_0(%arg0: i32, %arg1: i32) -> (i32, i32, i32) {
    %c0_i32 = arith.constant 0 : i32
    %c0_i32_0 = arith.constant 0 : i32
    return %arg0, %c0_i32, %arg1 : i32, i32, i32
  }
  func.func @transform_1(%arg0: i32, %arg1: i32) -> (i32, i32) {
    %c0_i32 = arith.constant 0 : i32
    %c0_i32_0 = arith.constant 0 : i32
    %c0_i32_1 = arith.constant 0 : i32
    return %c0_i32, %c0_i32_0 : i32, i32
  }
  func.func @transform_2(%arg0: i32, %arg1: i32) -> (i32, i32) {
    %c0_i32 = arith.constant 0 : i32
    %c0_i32_0 = arith.constant 0 : i32
    %c0_i32_1 = arith.constant 0 : i32
    return %c0_i32, %c0_i32_0 : i32, i32
  }
  func.func @transform_3(%arg0: i32, %arg1: i32) -> (i32, i32, i32) {
    %c0_i32 = arith.constant 0 : i32
    %c0_i32_0 = arith.constant 0 : i32
    return %arg0, %c0_i32, %arg1 : i32, i32, i32
  }
}

module attributes {stable_mosaic.version = 11 : i64} {
  func.func @kernel(%arg0: i32, %arg1: i32, %arg2: memref<1x72x64xbf16, #tpu.memory_space<vmem>>, %arg3: memref<16x72xbf16, #tpu.memory_space<vmem>>, %arg4: memref<16x1xf32, #tpu.memory_space<vmem>>, %arg5: memref<1x16x64xbf16, #tpu.memory_space<vmem>>) attributes {dimension_semantics = [#tpu.dimension_semantics<parallel>, #tpu.dimension_semantics<parallel>], iteration_bounds = array<i64: 2, 1>, scalar_prefetch = 0 : i64, scratch_operands = 0 : i64, tpu.core_type = #tpu.core_type<tc>, window_params = [{transform_indices = @transform_0, window_bounds = array<i64: 1, 72, 64>}, {pipeline_mode = #tpu.pipeline_mode<synchronous>, transform_indices = @transform_1, window_bounds = array<i64: 16, 72>}, {pipeline_mode = #tpu.pipeline_mode<synchronous>, transform_indices = @transform_2, window_bounds = array<i64: 16, 1>}, {transform_indices = @transform_3, window_bounds = array<i64: 1, 16, 64>}]} {
    %c0 = arith.constant 0 : index
    %c0_0 = arith.constant 0 : index
    %0 = vector.load %arg3[%c0, %c0_0] : memref<16x72xbf16, #tpu.memory_space<vmem>>, vector<16x72xbf16>
    %c0_1 = arith.constant 0 : index
    %c0_2 = arith.constant 0 : index
    %c0_3 = arith.constant 0 : index
    %1 = vector.load %arg2[%c0_1, %c0_2, %c0_3] : memref<1x72x64xbf16, #tpu.memory_space<vmem>>, vector<1x72x64xbf16>
    %2 = vector.shape_cast %1 : vector<1x72x64xbf16> to vector<72x64xbf16>
    %cst = arith.constant dense<0.000000e+00> : vector<16x64xf32>
    %3 = tpu.matmul %0, %2, %cst {dimension_numbers = #tpu.dot_dimension_numbers<[1], [0], [0], [1], [0, 0, 1, 1], [], []>} : vector<16x72xbf16>, vector<72x64xbf16>, vector<16x64xf32> -> vector<16x64xf32>
    %c0_4 = arith.constant 0 : index
    %c0_5 = arith.constant 0 : index
    %4 = vector.load %arg4[%c0_4, %c0_5] : memref<16x1xf32, #tpu.memory_space<vmem>>, vector<16x1xf32>
    %5 = vector.broadcast %4 : vector<16x1xf32> to vector<16x64xf32>
    %6 = arith.addf %3, %5 : vector<16x64xf32>
    %cst_6 = arith.constant 0.000000e+00 : f32
    %7 = vector.broadcast %cst_6 : f32 to vector<16x64xf32>
    %8 = arith.cmpf ogt, %6, %7 : vector<16x64xf32>
    %cst_7 = arith.constant 2.000000e-01 : f32
    %9 = vector.broadcast %cst_7 : f32 to vector<16x64xf32>
    %10 = arith.mulf %9, %6 : vector<16x64xf32>
    %11 = arith.select %8, %6, %10 : vector<16x64xi1>, vector<16x64xf32>
    %12 = arith.truncf %11 : vector<16x64xf32> to vector<16x64xbf16>
    %c0_8 = arith.constant 0 : index
    %c0_9 = arith.constant 0 : index
    %c0_10 = arith.constant 0 : index
    %13 = vector.load %arg5[%c0_8, %c0_9, %c0_10] : memref<1x16x64xbf16, #tpu.memory_space<vmem>>, vector<1x16x64xbf16>
    %14 = vector.shape_cast %13 : vector<1x16x64xbf16> to vector<16x64xbf16>
    %15 = vector.shape_cast %12 : vector<16x64xbf16> to vector<1x16x64xbf16>
    tpu.vector_store %arg5[%c0_8, %c0_9, %c0_10], %15 {strides = array<i32>} : memref<1x16x64xbf16, #tpu.memory_space<vmem>>, vector<1x16x64xbf16>,
    return
  }
  func.func @transform_0(%arg0: i32, %arg1: i32) -> (i32, i32, i32) {
    %c0_i32 = arith.constant 0 : i32
    %c0_i32_0 = arith.constant 0 : i32
    return %arg0, %c0_i32, %arg1 : i32, i32, i32
  }
  func.func @transform_1(%arg0: i32, %arg1: i32) -> (i32, i32) {
    %c0_i32 = arith.constant 0 : i32
    %c0_i32_0 = arith.constant 0 : i32
    %c0_i32_1 = arith.constant 0 : i32
    return %c0_i32, %c0_i32_0 : i32, i32
  }
  func.func @transform_2(%arg0: i32, %arg1: i32) -> (i32, i32) {
    %c0_i32 = arith.constant 0 : i32
    %c0_i32_0 = arith.constant 0 : i32
    %c0_i32_1 = arith.constant 0 : i32
    return %c0_i32, %c0_i32_0 : i32, i32
  }
  func.func @transform_3(%arg0: i32, %arg1: i32) -> (i32, i32, i32) {
    %c0_i32 = arith.constant 0 : i32
    %c0_i32_0 = arith.constant 0 : i32
    return %arg0, %c0_i32, %arg1 : i32, i32, i32
  }
}

module attributes {stable_mosaic.version = 11 : i64} {
  func.func @kernel(%arg0: i32, %arg1: i32, %arg2: memref<1x144x16xbf16, #tpu.memory_space<vmem>>, %arg3: memref<32x144xbf16, #tpu.memory_space<vmem>>, %arg4: memref<32x1xf32, #tpu.memory_space<vmem>>, %arg5: memref<1x32x16xbf16, #tpu.memory_space<vmem>>) attributes {dimension_semantics = [#tpu.dimension_semantics<parallel>, #tpu.dimension_semantics<parallel>], iteration_bounds = array<i64: 2, 1>, scalar_prefetch = 0 : i64, scratch_operands = 0 : i64, tpu.core_type = #tpu.core_type<tc>, window_params = [{transform_indices = @transform_0, window_bounds = array<i64: 1, 144, 16>}, {pipeline_mode = #tpu.pipeline_mode<synchronous>, transform_indices = @transform_1, window_bounds = array<i64: 32, 144>}, {pipeline_mode = #tpu.pipeline_mode<synchronous>, transform_indices = @transform_2, window_bounds = array<i64: 32, 1>}, {transform_indices = @transform_3, window_bounds = array<i64: 1, 32, 16>}]} {
    %c0 = arith.constant 0 : index
    %c0_0 = arith.constant 0 : index
    %0 = vector.load %arg3[%c0, %c0_0] : memref<32x144xbf16, #tpu.memory_space<vmem>>, vector<32x144xbf16>
    %c0_1 = arith.constant 0 : index
    %c0_2 = arith.constant 0 : index
    %c0_3 = arith.constant 0 : index
    %1 = vector.load %arg2[%c0_1, %c0_2, %c0_3] : memref<1x144x16xbf16, #tpu.memory_space<vmem>>, vector<1x144x16xbf16>
    %2 = vector.shape_cast %1 : vector<1x144x16xbf16> to vector<144x16xbf16>
    %cst = arith.constant dense<0.000000e+00> : vector<32x16xf32>
    %3 = tpu.matmul %0, %2, %cst {dimension_numbers = #tpu.dot_dimension_numbers<[1], [0], [0], [1], [0, 0, 1, 1], [], []>} : vector<32x144xbf16>, vector<144x16xbf16>, vector<32x16xf32> -> vector<32x16xf32>
    %c0_4 = arith.constant 0 : index
    %c0_5 = arith.constant 0 : index
    %4 = vector.load %arg4[%c0_4, %c0_5] : memref<32x1xf32, #tpu.memory_space<vmem>>, vector<32x1xf32>
    %5 = vector.broadcast %4 : vector<32x1xf32> to vector<32x16xf32>
    %6 = arith.addf %3, %5 : vector<32x16xf32>
    %cst_6 = arith.constant 0.000000e+00 : f32
    %7 = vector.broadcast %cst_6 : f32 to vector<32x16xf32>
    %8 = arith.cmpf ogt, %6, %7 : vector<32x16xf32>
    %cst_7 = arith.constant 2.000000e-01 : f32
    %9 = vector.broadcast %cst_7 : f32 to vector<32x16xf32>
    %10 = arith.mulf %9, %6 : vector<32x16xf32>
    %11 = arith.select %8, %6, %10 : vector<32x16xi1>, vector<32x16xf32>
    %12 = arith.truncf %11 : vector<32x16xf32> to vector<32x16xbf16>
    %c0_8 = arith.constant 0 : index
    %c0_9 = arith.constant 0 : index
    %c0_10 = arith.constant 0 : index
    %13 = vector.load %arg5[%c0_8, %c0_9, %c0_10] : memref<1x32x16xbf16, #tpu.memory_space<vmem>>, vector<1x32x16xbf16>
    %14 = vector.shape_cast %13 : vector<1x32x16xbf16> to vector<32x16xbf16>
    %15 = vector.shape_cast %12 : vector<32x16xbf16> to vector<1x32x16xbf16>
    tpu.vector_store %arg5[%c0_8, %c0_9, %c0_10], %15 {strides = array<i32>} : memref<1x32x16xbf16, #tpu.memory_space<vmem>>, vector<1x32x16xbf16>,
    return
  }
  func.func @transform_0(%arg0: i32, %arg1: i32) -> (i32, i32, i32) {
    %c0_i32 = arith.constant 0 : i32
    %c0_i32_0 = arith.constant 0 : i32
    return %arg0, %c0_i32, %arg1 : i32, i32, i32
  }
  func.func @transform_1(%arg0: i32, %arg1: i32) -> (i32, i32) {
    %c0_i32 = arith.constant 0 : i32
    %c0_i32_0 = arith.constant 0 : i32
    %c0_i32_1 = arith.constant 0 : i32
    return %c0_i32, %c0_i32_0 : i32, i32
  }
  func.func @transform_2(%arg0: i32, %arg1: i32) -> (i32, i32) {
    %c0_i32 = arith.constant 0 : i32
    %c0_i32_0 = arith.constant 0 : i32
    %c0_i32_1 = arith.constant 0 : i32
    return %c0_i32, %c0_i32_0 : i32, i32
  }
  func.func @transform_3(%arg0: i32, %arg1: i32) -> (i32, i32, i32) {
    %c0_i32 = arith.constant 0 : i32
    %c0_i32_0 = arith.constant 0 : i32
    return %arg0, %c0_i32, %arg1 : i32, i32, i32
  }
}

module attributes {stable_mosaic.version = 11 : i64} {
  func.func @kernel(%arg0: i32, %arg1: i32, %arg2: memref<1x288x4xbf16, #tpu.memory_space<vmem>>, %arg3: memref<8x288xbf16, #tpu.memory_space<vmem>>, %arg4: memref<8x1xf32, #tpu.memory_space<vmem>>, %arg5: memref<1x8x4xbf16, #tpu.memory_space<vmem>>) attributes {dimension_semantics = [#tpu.dimension_semantics<parallel>, #tpu.dimension_semantics<parallel>], iteration_bounds = array<i64: 2, 1>, scalar_prefetch = 0 : i64, scratch_operands = 0 : i64, tpu.core_type = #tpu.core_type<tc>, window_params = [{transform_indices = @transform_0, window_bounds = array<i64: 1, 288, 4>}, {pipeline_mode = #tpu.pipeline_mode<synchronous>, transform_indices = @transform_1, window_bounds = array<i64: 8, 288>}, {pipeline_mode = #tpu.pipeline_mode<synchronous>, transform_indices = @transform_2, window_bounds = array<i64: 8, 1>}, {transform_indices = @transform_3, window_bounds = array<i64: 1, 8, 4>}]} {
    %c0 = arith.constant 0 : index
    %c0_0 = arith.constant 0 : index
    %0 = vector.load %arg3[%c0, %c0_0] : memref<8x288xbf16, #tpu.memory_space<vmem>>, vector<8x288xbf16>
    %c0_1 = arith.constant 0 : index
    %c0_2 = arith.constant 0 : index
    %c0_3 = arith.constant 0 : index
    %1 = vector.load %arg2[%c0_1, %c0_2, %c0_3] : memref<1x288x4xbf16, #tpu.memory_space<vmem>>, vector<1x288x4xbf16>
    %2 = vector.shape_cast %1 : vector<1x288x4xbf16> to vector<288x4xbf16>
    %cst = arith.constant dense<0.000000e+00> : vector<8x4xf32>
    %3 = tpu.matmul %0, %2, %cst {dimension_numbers = #tpu.dot_dimension_numbers<[1], [0], [0], [1], [0, 0, 1, 1], [], []>} : vector<8x288xbf16>, vector<288x4xbf16>, vector<8x4xf32> -> vector<8x4xf32>
    %c0_4 = arith.constant 0 : index
    %c0_5 = arith.constant 0 : index
    %4 = vector.load %arg4[%c0_4, %c0_5] : memref<8x1xf32, #tpu.memory_space<vmem>>, vector<8x1xf32>
    %5 = vector.broadcast %4 : vector<8x1xf32> to vector<8x4xf32>
    %6 = arith.addf %3, %5 : vector<8x4xf32>
    %cst_6 = arith.constant 0.000000e+00 : f32
    %7 = vector.broadcast %cst_6 : f32 to vector<8x4xf32>
    %8 = arith.cmpf ogt, %6, %7 : vector<8x4xf32>
    %cst_7 = arith.constant 2.000000e-01 : f32
    %9 = vector.broadcast %cst_7 : f32 to vector<8x4xf32>
    %10 = arith.mulf %9, %6 : vector<8x4xf32>
    %11 = arith.select %8, %6, %10 : vector<8x4xi1>, vector<8x4xf32>
    %12 = arith.truncf %11 : vector<8x4xf32> to vector<8x4xbf16>
    %c0_8 = arith.constant 0 : index
    %c0_9 = arith.constant 0 : index
    %c0_10 = arith.constant 0 : index
    %13 = vector.load %arg5[%c0_8, %c0_9, %c0_10] : memref<1x8x4xbf16, #tpu.memory_space<vmem>>, vector<1x8x4xbf16>
    %14 = vector.shape_cast %13 : vector<1x8x4xbf16> to vector<8x4xbf16>
    %15 = vector.shape_cast %12 : vector<8x4xbf16> to vector<1x8x4xbf16>
    tpu.vector_store %arg5[%c0_8, %c0_9, %c0_10], %15 {strides = array<i32>} : memref<1x8x4xbf16, #tpu.memory_space<vmem>>, vector<1x8x4xbf16>,
    return
  }
  func.func @transform_0(%arg0: i32, %arg1: i32) -> (i32, i32, i32) {
    %c0_i32 = arith.constant 0 : i32
    %c0_i32_0 = arith.constant 0 : i32
    return %arg0, %c0_i32, %arg1 : i32, i32, i32
  }
  func.func @transform_1(%arg0: i32, %arg1: i32) -> (i32, i32) {
    %c0_i32 = arith.constant 0 : i32
    %c0_i32_0 = arith.constant 0 : i32
    %c0_i32_1 = arith.constant 0 : i32
    return %c0_i32, %c0_i32_0 : i32, i32
  }
  func.func @transform_2(%arg0: i32, %arg1: i32) -> (i32, i32) {
    %c0_i32 = arith.constant 0 : i32
    %c0_i32_0 = arith.constant 0 : i32
    %c0_i32_1 = arith.constant 0 : i32
    return %c0_i32, %c0_i32_0 : i32, i32
  }
  func.func @transform_3(%arg0: i32, %arg1: i32) -> (i32, i32, i32) {
    %c0_i32 = arith.constant 0 : i32
    %c0_i32_0 = arith.constant 0 : i32
    return %arg0, %c0_i32, %arg1 : i32, i32, i32
  }
}

module attributes {stable_mosaic.version = 11 : i64} {
  func.func @kernel(%arg0: i32, %arg1: i32, %arg2: memref<1x72x4xbf16, #tpu.memory_space<vmem>>, %arg3: memref<1x72xbf16, #tpu.memory_space<vmem>>, %arg4: memref<1x1xf32, #tpu.memory_space<vmem>>, %arg5: memref<1x1x4xf32, #tpu.memory_space<vmem>>) attributes {dimension_semantics = [#tpu.dimension_semantics<parallel>, #tpu.dimension_semantics<parallel>], iteration_bounds = array<i64: 2, 1>, scalar_prefetch = 0 : i64, scratch_operands = 0 : i64, tpu.core_type = #tpu.core_type<tc>, window_params = [{transform_indices = @transform_0, window_bounds = array<i64: 1, 72, 4>}, {pipeline_mode = #tpu.pipeline_mode<synchronous>, transform_indices = @transform_1, window_bounds = array<i64: 1, 72>}, {pipeline_mode = #tpu.pipeline_mode<synchronous>, transform_indices = @transform_2, window_bounds = array<i64: 1, 1>}, {transform_indices = @transform_3, window_bounds = array<i64: 1, 1, 4>}]} {
    %c0 = arith.constant 0 : index
    %c0_0 = arith.constant 0 : index
    %0 = vector.load %arg3[%c0, %c0_0] : memref<1x72xbf16, #tpu.memory_space<vmem>>, vector<1x72xbf16>
    %c0_1 = arith.constant 0 : index
    %c0_2 = arith.constant 0 : index
    %c0_3 = arith.constant 0 : index
    %1 = vector.load %arg2[%c0_1, %c0_2, %c0_3] : memref<1x72x4xbf16, #tpu.memory_space<vmem>>, vector<1x72x4xbf16>
    %2 = vector.shape_cast %1 : vector<1x72x4xbf16> to vector<72x4xbf16>
    %cst = arith.constant dense<0.000000e+00> : vector<1x4xf32>
    %3 = tpu.matmul %0, %2, %cst {dimension_numbers = #tpu.dot_dimension_numbers<[1], [0], [0], [1], [0, 0, 1, 1], [], []>} : vector<1x72xbf16>, vector<72x4xbf16>, vector<1x4xf32> -> vector<1x4xf32>
    %c0_4 = arith.constant 0 : index
    %c0_5 = arith.constant 0 : index
    %4 = vector.load %arg4[%c0_4, %c0_5] : memref<1x1xf32, #tpu.memory_space<vmem>>, vector<1x1xf32>
    %5 = vector.broadcast %4 : vector<1x1xf32> to vector<1x4xf32>
    %6 = arith.addf %3, %5 : vector<1x4xf32>
    %cst_6 = arith.constant 0.000000e+00 : f32
    %7 = vector.broadcast %cst_6 : f32 to vector<1x4xf32>
    %8 = arith.subf %7, %6 : vector<1x4xf32>
    %9 = math.exp %8 : vector<1x4xf32>
    %cst_7 = arith.constant 1.000000e+00 : f32
    %10 = vector.broadcast %cst_7 : f32 to vector<1x4xf32>
    %11 = arith.addf %10, %9 : vector<1x4xf32>
    %cst_8 = arith.constant 1.000000e+00 : f32
    %12 = vector.broadcast %cst_8 : f32 to vector<1x4xf32>
    %13 = arith.divf %12, %11 : vector<1x4xf32>
    %c0_9 = arith.constant 0 : index
    %c0_10 = arith.constant 0 : index
    %c0_11 = arith.constant 0 : index
    %14 = vector.load %arg5[%c0_9, %c0_10, %c0_11] : memref<1x1x4xf32, #tpu.memory_space<vmem>>, vector<1x1x4xf32>
    %15 = vector.shape_cast %14 : vector<1x1x4xf32> to vector<1x4xf32>
    %16 = vector.shape_cast %13 : vector<1x4xf32> to vector<1x1x4xf32>
    tpu.vector_store %arg5[%c0_9, %c0_10, %c0_11], %16 {strides = array<i32>} : memref<1x1x4xf32, #tpu.memory_space<vmem>>, vector<1x1x4xf32>,
    return
  }
  func.func @transform_0(%arg0: i32, %arg1: i32) -> (i32, i32, i32) {
    %c0_i32 = arith.constant 0 : i32
    %c0_i32_0 = arith.constant 0 : i32
    return %arg0, %c0_i32, %arg1 : i32, i32, i32
  }
  func.func @transform_1(%arg0: i32, %arg1: i32) -> (i32, i32) {
    %c0_i32 = arith.constant 0 : i32
    %c0_i32_0 = arith.constant 0 : i32
    %c0_i32_1 = arith.constant 0 : i32
    return %c0_i32, %c0_i32_0 : i32, i32
  }
  func.func @transform_2(%arg0: i32, %arg1: i32) -> (i32, i32) {
    %c0_i32 = arith.constant 0 : i32
    %c0_i32_0 = arith.constant 0 : i32
    %c0_i32_1 = arith.constant 0 : i32
    return %c0_i32, %c0_i32_0 : i32, i32
  }
  func.func @transform_3(%arg0: i32, %arg1: i32) -> (i32, i32, i32) {
    %c0_i32 = arith.constant 0 : i32
    %c0_i32_0 = arith.constant 0 : i32
    return %arg0, %c0_i32, %arg1 : i32, i32, i32
  }
}

</mosaic_0001>

<llo_original>
// kernel: discriminator_forward.5
$region0: #{discriminator_forward.5}
  #allocation0 [shape = 'u32[]', space=smem, size = 0x4, offset = 0x4, fixed_abs, tag = 'smem constant byte address 0x4 - core index']
  #allocation1 [shape = 'u32[144,128]{1,0:T(1,128)}', space=vmem, size = 0x12000, scoped, tag = 'internal scratch']
  %s0 = inlined_call_operand.vmem [shape: bf16[2,9,256], index: 0, kind: input, shape index: {}]
  %s1 = inlined_call_operand.vmem [shape: bf16[8,9], index: 1, kind: input, shape index: {}]
  %s2 = inlined_call_operand.vmem [shape: f32[8,1], index: 2, kind: input, shape index: {}]
  %s3 = inlined_call_operand.vmem [shape: bf16[2,8,256], index: 3, kind: output, shape index: {}]
  %s4 = sld [smem:[#allocation0]]
  $region45: #{discriminator_forward.5} parent=0
    _
  %s6 = ssub.s32 1, %s4
  %s7 = scalar_select 0, %s6, %s4
  loop: start=0, step=1, limit=4
  $region2: #{discriminator_forward.5} parent=0 // loop_pre_header
    _
  $region3: #{discriminator_forward.5} parent=0 // loop_header
    %s9 = sphi 0, %s13
    %p10 = scmp.ge.s32.totalorder %s9, 4
    %s16 = sphi 0, %s28
    %s17 = sphi 0, %s24
    %s18 = sphi 0, %s16
    %s19 = sphi 0, %s17
    %s20 = sphi 0, %s18
    %s21 = sphi 0, %s19
    %s33 = sphi 0, %s35
    %s36 = sphi 0, %s33
    %s37 = sphi 0, %s36
    %s53 = sphi 0, %s37
    %s57 = sphi 0, %s57
    %s59 = sphi 0, %s57
    %s60 = sphi 0, %s59
    %s74 = sphi 0, %s60
    %s78 = sphi 0, %s78
    %s80 = sphi 0, %s78
    %s81 = sphi 0, %s80
    %s95 = sphi 0, %s81
    %s103 = sphi 0, %s105
    %s106 = sphi 0, %s103
    %s107 = sphi 0, %s106
    %s123 = sphi 0, %s107
  $region4: #{discriminator_forward.5} parent=0 // loop_header_branch
    %12 = sbr.rel (%p10) target = $region8
  $region5: #{discriminator_forward.5} parent=0 // loop_body
    %s14 = ssub.s32 %s9, 1
    %s15 = ssub.s32 %s9, 2
    %s22 = sadd.s32 1, %s17
    %p23 = scmp.ge.s32.totalorder %s22, 1
    %s24 = scalar_select %p23, 0, %s22
    %s25 = sadd.s32 1, %s16
    %s26 = scalar_select %p23, %s25, %s16
    %p27 = scmp.ge.s32.totalorder %s26, 2
    %s28 = scalar_select %p27, 0, %s26
    %s29 = ssub.s32 %s16, %s28
    %s30 = ssub.s32 %s17, %s24
    %s31 = sor.u32 %s29, %s30
    %p32 = scmp.eq.s32.totalorder %s31, 0
    %s34 = sadd.s32 %s33, 1
    %s35 = scalar_select %p32, %s33, %s34
    %p38 = pneg %p32
    %p39 = scmp.eq.s32.totalorder %s9, 1
    %p40 = por %p38, %p39
    %p41 = scmp.ne.s32.totalorder %s33, %s36
    %p42 = scmp.eq.s32.totalorder %s9, 0
    %p43 = por %p41, %p42
    %p44 = scmp.ne.s32.totalorder %s33, %s36
    %p45 = scmp.eq.s32.totalorder %s14, 1
    %p46 = por %p44, %p45
    %p47 = scmp.ne.s32.totalorder %s36, %s37
    %p48 = scmp.eq.s32.totalorder %s14, 0
    %p49 = por %p47, %p48
    %p50 = scmp.ne.s32.totalorder %s36, %s37
    %p51 = scmp.eq.s32.totalorder %s15, 1
    %p52 = por %p50, %p51
    %p54 = scmp.ne.s32.totalorder %s37, %s53
    %p55 = scmp.eq.s32.totalorder %s15, 0
    %p56 = por %p54, %p55
    %s58 = sadd.s32 %s57, 1
    %p61 = scmp.eq.s32.totalorder %s9, 1
    %p62 = scmp.ne.s32.totalorder %s57, %s59
    %p63 = scmp.eq.s32.totalorder %s9, 0
    %p64 = por %p62, %p63
    %p65 = scmp.ne.s32.totalorder %s57, %s59
    %p66 = scmp.eq.s32.totalorder %s14, 1
    %p67 = por %p65, %p66
    %p68 = scmp.ne.s32.totalorder %s59, %s60
    %p69 = scmp.eq.s32.totalorder %s14, 0
    %p70 = por %p68, %p69
    %p71 = scmp.ne.s32.totalorder %s59, %s60
    %p72 = scmp.eq.s32.totalorder %s15, 1
    %p73 = por %p71, %p72
    %p75 = scmp.ne.s32.totalorder %s60, %s74
    %p76 = scmp.eq.s32.totalorder %s15, 0
    %p77 = por %p75, %p76
    %s79 = sadd.s32 %s78, 1
    %p82 = scmp.eq.s32.totalorder %s9, 1
    %p83 = scmp.ne.s32.totalorder %s78, %s80
    %p84 = scmp.eq.s32.totalorder %s9, 0
    %p85 = por %p83, %p84
    %p86 = scmp.ne.s32.totalorder %s78, %s80
    %p87 = scmp.eq.s32.totalorder %s14, 1
    %p88 = por %p86, %p87
    %p89 = scmp.ne.s32.totalorder %s80, %s81
    %p90 = scmp.eq.s32.totalorder %s14, 0
    %p91 = por %p89, %p90
    %p92 = scmp.ne.s32.totalorder %s80, %s81
    %p93 = scmp.eq.s32.totalorder %s15, 1
    %p94 = por %p92, %p93
    %p96 = scmp.ne.s32.totalorder %s81, %s95
    %p97 = scmp.eq.s32.totalorder %s15, 0
    %p98 = por %p96, %p97
    %s99 = ssub.s32 %s16, %s28
    %s100 = ssub.s32 %s17, %s24
    %s101 = sor.u32 %s99, %s100
    %p102 = scmp.eq.s32.totalorder %s101, 0
    %s104 = sadd.s32 %s103, 1
    %s105 = scalar_select %p102, %s103, %s104
    %p108 = pneg %p102
    %p109 = scmp.eq.s32.totalorder %s9, 1
    %p110 = por %p108, %p109
    %p111 = scmp.ne.s32.totalorder %s103, %s106
    %p112 = scmp.eq.s32.totalorder %s9, 0
    %p113 = por %p111, %p112
    %p114 = scmp.ne.s32.totalorder %s103, %s106
    %p115 = scmp.eq.s32.totalorder %s14, 1
    %p116 = por %p114, %p115
    %p117 = scmp.ne.s32.totalorder %s106, %s107
    %p118 = scmp.eq.s32.totalorder %s14, 0
    %p119 = por %p117, %p118
    %p120 = scmp.ne.s32.totalorder %s106, %s107
    %p121 = scmp.eq.s32.totalorder %s15, 1
    %p122 = por %p120, %p121
    %p124 = scmp.ne.s32.totalorder %s107, %s123
    %p125 = scmp.eq.s32.totalorder %s15, 0
    %p126 = por %p124, %p125
    %p127 = scmp.le.s32.totalorder 1, %s9
    %p128 = scmp.lt.s32.totalorder %s9, 3
    %p129 = pnand %p127, %p128
    %p130 = pneg %p129
    // Predicated region
    $region9: #{discriminator_forward.5} parent=5 // pred_check
      _
    $region10: #{discriminator_forward.5} parent=5 // pred_check_branch
      %132 = sbr.rel (%p129) target = $region12
    $region11: #{discriminator_forward.5} parent=5 // pred_region
      %s133 = ssub.s32 %s9, 1
      // Predicated region
      $region13: #{discriminator_forward.5} parent=11 // pred_check
        %p134 = pneg %p70
      $region14: #{discriminator_forward.5} parent=11 // pred_check_branch
        %136 = sbr.rel (%p134) target = $region16
      $region15: #{discriminator_forward.5} parent=11 // pred_region
        _
      $region16: #{discriminator_forward.5} parent=11 // pred_fallthru
        _
      // Predicated region
      $region17: #{discriminator_forward.5} parent=11 // pred_check
        %p137 = pneg %p91
      $region18: #{discriminator_forward.5} parent=11 // pred_check_branch
        %139 = sbr.rel (%p137) target = $region20
      $region19: #{discriminator_forward.5} parent=11 // pred_region
        _
      $region20: #{discriminator_forward.5} parent=11 // pred_fallthru
        _
    $region12: #{discriminator_forward.5} parent=5 // pred_fallthru
      _
    %p140 = scmp.lt.s32.totalorder %s9, 2
    // Predicated region
    $region21: #{discriminator_forward.5} parent=5 // pred_check
      %p141 = pneg %p140
    $region22: #{discriminator_forward.5} parent=5 // pred_check_branch
      %143 = sbr.rel (%p141) target = $region24
    $region23: #{discriminator_forward.5} parent=5 // pred_region
      // Predicated region
      $region25: #{discriminator_forward.5} parent=23 // pred_check
        %p144 = pneg %p43
      $region26: #{discriminator_forward.5} parent=23 // pred_check_branch
        %146 = sbr.rel (%p144) target = $region28
      $region27: #{discriminator_forward.5} parent=23 // pred_region
        %s147 = smul.u32 2, %s17
        %p148 = scmp.lt.s32.totalorder %s16, 1
        %s149 = scalar_select %p148, %s16, 1
        %p150 = scmp.lt.s32.totalorder %s147, 1
        %s151 = scalar_select %p150, %s147, 1
        %s152 = smul.addr %s149, 4
        %s153 = sadd.s32 %s151, %s152
        %s154 = smul.addr %s153, 4
        %s155 = scalar_lea.vmem %s0, %s154
        %s156 = smul.u32 2, %s17
      $region28: #{discriminator_forward.5} parent=23 // pred_fallthru
        _
    $region24: #{discriminator_forward.5} parent=5 // pred_fallthru
      _
    %p157 = scmp.le.s32.totalorder 1, %s9
    %p158 = scmp.lt.s32.totalorder %s9, 3
    %p159 = pnand %p157, %p158
    %p160 = pneg %p159
    // Predicated region
    $region29: #{discriminator_forward.5} parent=5 // pred_check
      _
    $region30: #{discriminator_forward.5} parent=5 // pred_check_branch
      %162 = sbr.rel (%p159) target = $region32
    $region31: #{discriminator_forward.5} parent=5 // pred_region
      %s163 = ssub.s32 %s9, 1
      %s164 = smul.u32 2, %s19
      %p165 = scmp.lt.s32.totalorder %s18, 1
      %s166 = scalar_select %p165, %s18, 1
      %p167 = scmp.lt.s32.totalorder %s164, 1
      %s168 = scalar_select %p167, %s164, 1
      %s169 = smul.addr %s166, 4
      %s170 = sadd.s32 %s168, %s169
      %s171 = smul.addr %s170, 4
      %s172 = scalar_lea.vmem %s0, %s171
      %p173 = pneg %p49
      %p174 = pneg %p46
      %p175 = pneg %p70
      %p176 = pneg %p67
      %p177 = pneg %p91
      %p178 = pneg %p88
      %p179 = pneg %p119
      %p180 = pneg %p116
      %s181 = smul.u32 2, %s19
      %p182 = scmp.lt.s32.totalorder %s18, 1
      %s183 = scalar_select %p182, %s18, 1
      %p184 = scmp.lt.s32.totalorder %s181, 1
      %s185 = scalar_select %p184, %s181, 1
      %s186 = smul.addr %s183, 2
      %s187 = sadd.s32 %s185, %s186
      %s188 = smul.addr %s187, 4
      %s189 = scalar_lea.vmem %s3, %s188
      %s190 = smul.u32 2, %s19
      %p191 = scmp.lt.s32.totalorder %s18, 1
      %s192 = scalar_select %p191, %s18, 1
      %p193 = scmp.lt.s32.totalorder %s190, 1
      %s194 = scalar_select %p193, %s190, 1
      %s195 = smul.addr %s192, 4
      %s196 = sadd.s32 %s194, %s195
      %s197 = smul.addr %s196, 4
      %s198 = scalar_lea.vmem %s0, %s197
      %s199 = smul.u32 2, %s19
      %s200 = smul.u32 2, %s19
      %p201 = scmp.lt.s32.totalorder %s18, 1
      %s202 = scalar_select %p201, %s18, 1
      %p203 = scmp.lt.s32.totalorder %s200, 1
      %s204 = scalar_select %p203, %s200, 1
      %s205 = smul.addr %s202, 2
      %s206 = sadd.s32 %s204, %s205
      %s207 = smul.addr %s206, 4
      %s208 = scalar_lea.vmem %s3, %s207
      %s209 = smul.u32 2, %s19
      %v211 = vld [vmem:[%s1] sm:$0xf]
      %v212 = vld [vmem:[%s198] sm:$0xff]
      %v213 = vld [vmem:[%s198 + $0x8] sm:$0x11]
      %v214 = vld [vmem:[%s2] sm:$0xff]
      %216 = vset.pattern.permute.xlu0 0
      %217 = vperm.xlu0 %216, %v214
      %v218 = vpop.permute.xlu0 %217
      %v222 = vunpack.c.l.b16 %v212
      %v223 = vunpack.c.h.b16 %v212
      %v224 = vunpack.c.l.b16 %v213
      %v225 = vunpack.c.h.b16 %v213
      %v226 = vpack.c.b16 %v224, %v222
      %v227 = vpack.c.b16 %v225, %v223
      %vm228 = vcmask 72704
      %v230 = vsel %vm228, %v211, 0
      %vm232 = vcmask 1043456
      %vm233 = vcmask 1044480
      %v234 = vsel %vm232, 4294967295, 65535
      %v235 = vsel %vm233, %v234, 0
      %v237 = vand.u32 %v226, %v235
      %v240 = vand.u32 %v227, %v235
      %242 = vmatprep.subr.bf16.mxu0 %v240
      %243 = vmatpush1.bf16.msra.mxu0 %v237
      %244 = vmatprep.subr.bf16.mxu0 0
      %245 = vmatpush1.bf16.msra.mxu0 0
      %246 = vmatprep.subr.bf16.mxu0 0
      %247 = vmatpush1.bf16.msra.mxu0 0
      %248 = vmatprep.subr.bf16.mxu0 0
      %249 = vmatpush1.bf16.msra.mxu0 0
      %250 = vmatprep.subr.bf16.mxu0 0
      %251 = vmatpush1.bf16.msra.mxu0 0
      %252 = vmatprep.subr.bf16.mxu0 0
      %253 = vmatpush1.bf16.msra.mxu0 0
      %254 = vmatprep.subr.bf16.mxu0 0
      %255 = vmatpush1.bf16.msra.mxu0 0
      %256 = vmatprep.subr.bf16.mxu0 0
      %257 = vmatpush1.bf16.msra.mxu0 0
      %258 = vmatprep.subr.bf16.mxu0 0
      %259 = vmatpush1.bf16.msra.mxu0 0
      %260 = vmatprep.subr.bf16.mxu0 0
      %261 = vmatpush1.bf16.msra.mxu0 0
      %262 = vmatprep.subr.bf16.mxu0 0
      %263 = vmatpush1.bf16.msra.mxu0 0
      %264 = vmatprep.subr.bf16.mxu0 0
      %265 = vmatpush1.bf16.msra.mxu0 0
      %266 = vmatprep.subr.bf16.mxu0 0
      %267 = vmatpush1.bf16.msra.mxu0 0
      %268 = vmatprep.subr.bf16.mxu0 0
      %269 = vmatpush1.bf16.msra.mxu0 0
      %270 = vmatprep.subr.bf16.mxu0 0
      %271 = vmatpush1.bf16.msra.mxu0 0
      %272 = vmatprep.subr.bf16.mxu0 0
      %273 = vmatpush1.bf16.msra.mxu0 0
      %274 = vmatprep.mubr.bf16.mxu0 0
      %275 = vmatmul.mubr.bf16.gmra.mrb[0].mxu0 %v230
      %v276 = vpop.f32.mrb[0].mxu0
      %v277 = vadd.f32 %v218, %v276
      %v278 = vpop.f32.mrb[0].mxu0
      %v279 = vadd.f32 %v218, %v278
      %v280 = vpop.f32.mrb[0].mxu0
      %v281 = vpop.f32.mrb[0].mxu0
      %282 = vdwg.mxu0
      %vm283 = vcmp.gt.f32.partialorder %v277, 0.0
      %vm284 = vcmp.gt.f32.partialorder %v279, 0.0
      %v285 = vmul.f32 %v277, 0.2
      %v286 = vmul.f32 %v279, 0.2
      %v287 = vsel %vm283, %v277, %v285
      %v288 = vsel %vm284, %v279, %v286
      %v289 = vpack.c.bf16 %v287, %v287
      %v290 = vpack.c.bf16 %v288, %v288
      %v293 = vunpack.c.l.b16 %v289
      %v294 = vunpack.c.l.b16 %v290
      %v295 = vpack.c.b16 %v294, %v293
      %297 = vst [vmem:[%s208] sm:$0xff] %v295
      %s298 = smul.u32 2, %s19
      %p299 = scmp.lt.s32.totalorder %s18, 1
      %s300 = scalar_select %p299, %s18, 1
      %p301 = scmp.lt.s32.totalorder %s298, 1
      %s302 = scalar_select %p301, %s298, 1
      %s303 = smul.addr %s300, 2
      %s304 = sadd.s32 %s302, %s303
      %s305 = smul.addr %s304, 4
      %s306 = scalar_lea.vmem %s3, %s305
      // Predicated region
      $region33: #{discriminator_forward.5} parent=31 // pred_check
        %p307 = pneg %p116
      $region34: #{discriminator_forward.5} parent=31 // pred_check_branch
        %309 = sbr.rel (%p307) target = $region36
      $region35: #{discriminator_forward.5} parent=31 // pred_region
        %s310 = smul.u32 2, %s19
      $region36: #{discriminator_forward.5} parent=31 // pred_fallthru
        _
    $region32: #{discriminator_forward.5} parent=5 // pred_fallthru
      _
    %p311 = scmp.le.s32.totalorder 2, %s9
    // Predicated region
    $region37: #{discriminator_forward.5} parent=5 // pred_check
      %p312 = pneg %p311
    $region38: #{discriminator_forward.5} parent=5 // pred_check_branch
      %314 = sbr.rel (%p312) target = $region40
    $region39: #{discriminator_forward.5} parent=5 // pred_region
      %s315 = ssub.s32 %s9, 2
      // Predicated region
      $region41: #{discriminator_forward.5} parent=39 // pred_check
        %p316 = pneg %p122
      $region42: #{discriminator_forward.5} parent=39 // pred_check_branch
        %318 = sbr.rel (%p316) target = $region44
      $region43: #{discriminator_forward.5} parent=39 // pred_region
        %s319 = smul.u32 2, %s21
        %p320 = scmp.lt.s32.totalorder %s20, 1
        %s321 = scalar_select %p320, %s20, 1
        %p322 = scmp.lt.s32.totalorder %s319, 1
        %s323 = scalar_select %p322, %s319, 1
        %s324 = smul.addr %s321, 2
        %s325 = sadd.s32 %s323, %s324
        %s326 = smul.addr %s325, 4
        %s327 = scalar_lea.vmem %s3, %s326
      $region44: #{discriminator_forward.5} parent=39 // pred_fallthru
        _
    $region40: #{discriminator_forward.5} parent=5 // pred_fallthru
      _
  $region6: #{discriminator_forward.5} parent=0 // loop_footer
    %s13 = sadd.s32 1, %s9
  $region7: #{discriminator_forward.5} parent=0 // loop_footer_branch
    %8 = sbr.rel target = $region3
  $region8: #{discriminator_forward.5} parent=0 // loop_exit
    _

// kernel: discriminator_forward.6
$region0: #{discriminator_forward.6}
  #allocation0 [shape = 'u32[]', space=smem, size = 0x4, offset = 0x4, fixed_abs, tag = 'smem constant byte address 0x4 - core index']
  #allocation1 [shape = 'u32[144,128]{1,0:T(1,128)}', space=vmem, size = 0x12000, scoped, tag = 'internal scratch']
  %s0 = inlined_call_operand.vmem [shape: bf16[2,72,64], index: 0, kind: input, shape index: {}]
  %s1 = inlined_call_operand.vmem [shape: bf16[16,72], index: 1, kind: input, shape index: {}]
  %s2 = inlined_call_operand.vmem [shape: f32[16,1], index: 2, kind: input, shape index: {}]
  %s3 = inlined_call_operand.vmem [shape: bf16[2,16,64], index: 3, kind: output, shape index: {}]
  %s4 = sld [smem:[#allocation0]]
  $region45: #{discriminator_forward.6} parent=0
    _
  %s6 = ssub.s32 1, %s4
  %s7 = scalar_select 0, %s6, %s4
  loop: start=0, step=1, limit=4
  $region2: #{discriminator_forward.6} parent=0 // loop_pre_header
    _
  $region3: #{discriminator_forward.6} parent=0 // loop_header
    %s9 = sphi 0, %s13
    %p10 = scmp.ge.s32.totalorder %s9, 4
    %s16 = sphi 0, %s28
    %s17 = sphi 0, %s24
    %s18 = sphi 0, %s16
    %s19 = sphi 0, %s17
    %s20 = sphi 0, %s18
    %s21 = sphi 0, %s19
    %s33 = sphi 0, %s35
    %s36 = sphi 0, %s33
    %s37 = sphi 0, %s36
    %s53 = sphi 0, %s37
    %s57 = sphi 0, %s57
    %s59 = sphi 0, %s57
    %s60 = sphi 0, %s59
    %s74 = sphi 0, %s60
    %s78 = sphi 0, %s78
    %s80 = sphi 0, %s78
    %s81 = sphi 0, %s80
    %s95 = sphi 0, %s81
    %s103 = sphi 0, %s105
    %s106 = sphi 0, %s103
    %s107 = sphi 0, %s106
    %s123 = sphi 0, %s107
  $region4: #{discriminator_forward.6} parent=0 // loop_header_branch
    %12 = sbr.rel (%p10) target = $region8
  $region5: #{discriminator_forward.6} parent=0 // loop_body
    %s14 = ssub.s32 %s9, 1
    %s15 = ssub.s32 %s9, 2
    %s22 = sadd.s32 1, %s17
    %p23 = scmp.ge.s32.totalorder %s22, 1
    %s24 = scalar_select %p23, 0, %s22
    %s25 = sadd.s32 1, %s16
    %s26 = scalar_select %p23, %s25, %s16
    %p27 = scmp.ge.s32.totalorder %s26, 2
    %s28 = scalar_select %p27, 0, %s26
    %s29 = ssub.s32 %s16, %s28
    %s30 = ssub.s32 %s17, %s24
    %s31 = sor.u32 %s29, %s30
    %p32 = scmp.eq.s32.totalorder %s31, 0
    %s34 = sadd.s32 %s33, 1
    %s35 = scalar_select %p32, %s33, %s34
    %p38 = pneg %p32
    %p39 = scmp.eq.s32.totalorder %s9, 1
    %p40 = por %p38, %p39
    %p41 = scmp.ne.s32.totalorder %s33, %s36
    %p42 = scmp.eq.s32.totalorder %s9, 0
    %p43 = por %p41, %p42
    %p44 = scmp.ne.s32.totalorder %s33, %s36
    %p45 = scmp.eq.s32.totalorder %s14, 1
    %p46 = por %p44, %p45
    %p47 = scmp.ne.s32.totalorder %s36, %s37
    %p48 = scmp.eq.s32.totalorder %s14, 0
    %p49 = por %p47, %p48
    %p50 = scmp.ne.s32.totalorder %s36, %s37
    %p51 = scmp.eq.s32.totalorder %s15, 1
    %p52 = por %p50, %p51
    %p54 = scmp.ne.s32.totalorder %s37, %s53
    %p55 = scmp.eq.s32.totalorder %s15, 0
    %p56 = por %p54, %p55
    %s58 = sadd.s32 %s57, 1
    %p61 = scmp.eq.s32.totalorder %s9, 1
    %p62 = scmp.ne.s32.totalorder %s57, %s59
    %p63 = scmp.eq.s32.totalorder %s9, 0
    %p64 = por %p62, %p63
    %p65 = scmp.ne.s32.totalorder %s57, %s59
    %p66 = scmp.eq.s32.totalorder %s14, 1
    %p67 = por %p65, %p66
    %p68 = scmp.ne.s32.totalorder %s59, %s60
    %p69 = scmp.eq.s32.totalorder %s14, 0
    %p70 = por %p68, %p69
    %p71 = scmp.ne.s32.totalorder %s59, %s60
    %p72 = scmp.eq.s32.totalorder %s15, 1
    %p73 = por %p71, %p72
    %p75 = scmp.ne.s32.totalorder %s60, %s74
    %p76 = scmp.eq.s32.totalorder %s15, 0
    %p77 = por %p75, %p76
    %s79 = sadd.s32 %s78, 1
    %p82 = scmp.eq.s32.totalorder %s9, 1
    %p83 = scmp.ne.s32.totalorder %s78, %s80
    %p84 = scmp.eq.s32.totalorder %s9, 0
    %p85 = por %p83, %p84
    %p86 = scmp.ne.s32.totalorder %s78, %s80
    %p87 = scmp.eq.s32.totalorder %s14, 1
    %p88 = por %p86, %p87
    %p89 = scmp.ne.s32.totalorder %s80, %s81
    %p90 = scmp.eq.s32.totalorder %s14, 0
    %p91 = por %p89, %p90
    %p92 = scmp.ne.s32.totalorder %s80, %s81
    %p93 = scmp.eq.s32.totalorder %s15, 1
    %p94 = por %p92, %p93
    %p96 = scmp.ne.s32.totalorder %s81, %s95
    %p97 = scmp.eq.s32.totalorder %s15, 0
    %p98 = por %p96, %p97
    %s99 = ssub.s32 %s16, %s28
    %s100 = ssub.s32 %s17, %s24
    %s101 = sor.u32 %s99, %s100
    %p102 = scmp.eq.s32.totalorder %s101, 0
    %s104 = sadd.s32 %s103, 1
    %s105 = scalar_select %p102, %s103, %s104
    %p108 = pneg %p102
    %p109 = scmp.eq.s32.totalorder %s9, 1
    %p110 = por %p108, %p109
    %p111 = scmp.ne.s32.totalorder %s103, %s106
    %p112 = scmp.eq.s32.totalorder %s9, 0
    %p113 = por %p111, %p112
    %p114 = scmp.ne.s32.totalorder %s103, %s106
    %p115 = scmp.eq.s32.totalorder %s14, 1
    %p116 = por %p114, %p115
    %p117 = scmp.ne.s32.totalorder %s106, %s107
    %p118 = scmp.eq.s32.totalorder %s14, 0
    %p119 = por %p117, %p118
    %p120 = scmp.ne.s32.totalorder %s106, %s107
    %p121 = scmp.eq.s32.totalorder %s15, 1
    %p122 = por %p120, %p121
    %p124 = scmp.ne.s32.totalorder %s107, %s123
    %p125 = scmp.eq.s32.totalorder %s15, 0
    %p126 = por %p124, %p125
    %p127 = scmp.le.s32.totalorder 1, %s9
    %p128 = scmp.lt.s32.totalorder %s9, 3
    %p129 = pnand %p127, %p128
    %p130 = pneg %p129
    // Predicated region
    $region9: #{discriminator_forward.6} parent=5 // pred_check
      _
    $region10: #{discriminator_forward.6} parent=5 // pred_check_branch
      %132 = sbr.rel (%p129) target = $region12
    $region11: #{discriminator_forward.6} parent=5 // pred_region
      %s133 = ssub.s32 %s9, 1
      // Predicated region
      $region13: #{discriminator_forward.6} parent=11 // pred_check
        %p134 = pneg %p70
      $region14: #{discriminator_forward.6} parent=11 // pred_check_branch
        %136 = sbr.rel (%p134) target = $region16
      $region15: #{discriminator_forward.6} parent=11 // pred_region
        _
      $region16: #{discriminator_forward.6} parent=11 // pred_fallthru
        _
      // Predicated region
      $region17: #{discriminator_forward.6} parent=11 // pred_check
        %p137 = pneg %p91
      $region18: #{discriminator_forward.6} parent=11 // pred_check_branch
        %139 = sbr.rel (%p137) target = $region20
      $region19: #{discriminator_forward.6} parent=11 // pred_region
        _
      $region20: #{discriminator_forward.6} parent=11 // pred_fallthru
        _
    $region12: #{discriminator_forward.6} parent=5 // pred_fallthru
      _
    %p140 = scmp.lt.s32.totalorder %s9, 2
    // Predicated region
    $region21: #{discriminator_forward.6} parent=5 // pred_check
      %p141 = pneg %p140
    $region22: #{discriminator_forward.6} parent=5 // pred_check_branch
      %143 = sbr.rel (%p141) target = $region24
    $region23: #{discriminator_forward.6} parent=5 // pred_region
      // Predicated region
      $region25: #{discriminator_forward.6} parent=23 // pred_check
        %p144 = pneg %p43
      $region26: #{discriminator_forward.6} parent=23 // pred_check_branch
        %146 = sbr.rel (%p144) target = $region28
      $region27: #{discriminator_forward.6} parent=23 // pred_region
        %p147 = scmp.lt.s32.totalorder %s16, 1
        %s148 = scalar_select %p147, %s16, 1
        %p149 = scmp.lt.s32.totalorder %s17, 0
        %s150 = scalar_select %p149, %s17, 0
        %s151 = smul.addr %s148, 9
        %s152 = sadd.s32 %s150, %s151
        %s153 = smul.addr %s152, 4
        %s154 = scalar_lea.vmem %s0, %s153
      $region28: #{discriminator_forward.6} parent=23 // pred_fallthru
        _
    $region24: #{discriminator_forward.6} parent=5 // pred_fallthru
      _
    %p155 = scmp.le.s32.totalorder 1, %s9
    %p156 = scmp.lt.s32.totalorder %s9, 3
    %p157 = pnand %p155, %p156
    %p158 = pneg %p157
    // Predicated region
    $region29: #{discriminator_forward.6} parent=5 // pred_check
      _
    $region30: #{discriminator_forward.6} parent=5 // pred_check_branch
      %160 = sbr.rel (%p157) target = $region32
    $region31: #{discriminator_forward.6} parent=5 // pred_region
      %s161 = ssub.s32 %s9, 1
      %p162 = scmp.lt.s32.totalorder %s18, 1
      %s163 = scalar_select %p162, %s18, 1
      %p164 = scmp.lt.s32.totalorder %s19, 0
      %s165 = scalar_select %p164, %s19, 0
      %s166 = smul.addr %s163, 9
      %s167 = sadd.s32 %s165, %s166
      %s168 = smul.addr %s167, 4
      %s169 = scalar_lea.vmem %s0, %s168
      %p170 = pneg %p49
      %p171 = pneg %p46
      %p172 = pneg %p70
      %p173 = pneg %p67
      %p174 = pneg %p91
      %p175 = pneg %p88
      %p176 = pneg %p119
      %p177 = pneg %p116
      %p178 = scmp.lt.s32.totalorder %s18, 1
      %s179 = scalar_select %p178, %s18, 1
      %p180 = scmp.lt.s32.totalorder %s19, 0
      %s181 = scalar_select %p180, %s19, 0
      %s182 = smul.addr %s179, 2
      %s183 = sadd.s32 %s181, %s182
      %s184 = smul.addr %s183, 4
      %s185 = scalar_lea.vmem %s3, %s184
      %p186 = scmp.lt.s32.totalorder %s18, 1
      %s187 = scalar_select %p186, %s18, 1
      %p188 = scmp.lt.s32.totalorder %s19, 0
      %s189 = scalar_select %p188, %s19, 0
      %s190 = smul.addr %s187, 9
      %s191 = sadd.s32 %s189, %s190
      %s192 = smul.addr %s191, 4
      %s193 = scalar_lea.vmem %s0, %s192
      %p194 = scmp.lt.s32.totalorder %s18, 1
      %s195 = scalar_select %p194, %s18, 1
      %p196 = scmp.lt.s32.totalorder %s19, 0
      %s197 = scalar_select %p196, %s19, 0
      %s198 = smul.addr %s195, 2
      %s199 = sadd.s32 %s197, %s198
      %s200 = smul.addr %s199, 4
      %s201 = scalar_lea.vmem %s3, %s200
      %v203 = vld [vmem:[%s1] sm:$0xf]
      %v204 = vld [vmem:[%s1 + $0x4] sm:$0xf]
      %v205 = vld [vmem:[%s193] sm:$0xf]
      %v206 = vld [vmem:[%s193 + $0x4] sm:$0xf]
      %v207 = vld [vmem:[%s193 + $0x8] sm:$0xf]
      %v208 = vld [vmem:[%s193 + $0xc] sm:$0xf]
      %v209 = vld [vmem:[%s193 + $0x10] sm:$0xf]
      %v210 = vld [vmem:[%s193 + $0x14] sm:$0xf]
      %v211 = vld [vmem:[%s193 + $0x18] sm:$0xf]
      %v212 = vld [vmem:[%s193 + $0x1c] sm:$0xf]
      %v213 = vld [vmem:[%s193 + $0x20] sm:$0xf]
      %v214 = vld [vmem:[%s2] sm:$0xff]
      %v215 = vld [vmem:[%s2 + $0x8] sm:$0xff]
      %217 = vset.pattern.permute.xlu0 0
      %218 = vperm.xlu0 %217, %v214
      %v219 = vpop.permute.xlu0 %218
      %222 = vset.pattern.permute.xlu0 0
      %223 = vperm.xlu0 %222, %v215
      %v224 = vpop.permute.xlu0 %223
      %v228 = vunpack.c.l.b16 %v203
      %v229 = vunpack.c.l.b16 %v204
      %v230 = vpack.c.b16 %v229, %v228
      %v240 = vunpack.c.l.b16 %v205
      %v241 = vunpack.c.l.b16 %v206
      %v242 = vunpack.c.l.b16 %v207
      %v243 = vunpack.c.l.b16 %v208
      %v244 = vunpack.c.l.b16 %v209
      %v245 = vunpack.c.l.b16 %v210
      %v246 = vunpack.c.l.b16 %v211
      %v247 = vunpack.c.l.b16 %v212
      %v248 = vunpack.c.l.b16 %v213
      %v249 = vpack.c.b16 %v241, %v240
      %v250 = vpack.c.b16 %v243, %v242
      %v251 = vpack.c.b16 %v245, %v244
      %v252 = vpack.c.b16 %v247, %v246
      %v253 = vpack.c.b16 %v248, %v248
      %vm258 = vcmask 588800
      %v260 = vsel %vm258, %v230, 0
      %vm262 = vcmask 1043456
      %v264 = vsel %vm262, %v253, 0
      %266 = vmatprep.subr.bf16.mxu0 0
      %267 = vmatpush1.bf16.msra.mxu0 %v249
      %268 = vmatprep.subr.bf16.mxu0 0
      %269 = vmatpush1.bf16.msra.mxu0 %v250
      %270 = vmatprep.subr.bf16.mxu0 0
      %271 = vmatpush1.bf16.msra.mxu0 %v251
      %272 = vmatprep.subr.bf16.mxu0 0
      %273 = vmatpush1.bf16.msra.mxu0 %v252
      %274 = vmatprep.subr.bf16.mxu0 0
      %275 = vmatpush1.bf16.msra.mxu0 %v264
      %276 = vmatprep.subr.bf16.mxu0 0
      %277 = vmatpush1.bf16.msra.mxu0 0
      %278 = vmatprep.subr.bf16.mxu0 0
      %279 = vmatpush1.bf16.msra.mxu0 0
      %280 = vmatprep.subr.bf16.mxu0 0
      %281 = vmatpush1.bf16.msra.mxu0 0
      %282 = vmatprep.subr.bf16.mxu0 0
      %283 = vmatpush1.bf16.msra.mxu0 0
      %284 = vmatprep.subr.bf16.mxu0 0
      %285 = vmatpush1.bf16.msra.mxu0 0
      %286 = vmatprep.subr.bf16.mxu0 0
      %287 = vmatpush1.bf16.msra.mxu0 0
      %288 = vmatprep.subr.bf16.mxu0 0
      %289 = vmatpush1.bf16.msra.mxu0 0
      %290 = vmatprep.subr.bf16.mxu0 0
      %291 = vmatpush1.bf16.msra.mxu0 0
      %292 = vmatprep.subr.bf16.mxu0 0
      %293 = vmatpush1.bf16.msra.mxu0 0
      %294 = vmatprep.subr.bf16.mxu0 0
      %295 = vmatpush1.bf16.msra.mxu0 0
      %296 = vmatprep.subr.bf16.mxu0 0
      %297 = vmatpush1.bf16.msra.mxu0 0
      %298 = vmatprep.mubr.bf16.mxu0 0
      %299 = vmatmul.mubr.bf16.gmra.mrb[0].mxu0 %v260
      %v300 = vpop.f32.mrb[0].mxu0
      %v301 = vadd.f32 %v219, %v300
      %v302 = vpop.f32.mrb[0].mxu0
      %v303 = vpop.f32.mrb[0].mxu0
      %v304 = vadd.f32 %v224, %v303
      %v305 = vpop.f32.mrb[0].mxu0
      %306 = vdwg.mxu0
      %vm307 = vcmp.gt.f32.partialorder %v301, 0.0
      %vm308 = vcmp.gt.f32.partialorder %v304, 0.0
      %v309 = vmul.f32 %v301, 0.2
      %v310 = vmul.f32 %v304, 0.2
      %v311 = vsel %vm307, %v301, %v309
      %v312 = vsel %vm308, %v304, %v310
      %v313 = vpack.c.bf16 %v312, %v311
      %v315 = vunpack.c.l.b16 %v313
      %v316 = vunpack.c.h.b16 %v313
      %v317 = vpack.c.b16 %v315, %v315
      %v318 = vpack.c.b16 %v316, %v316
      %vm321 = vcmask 519168
      %322 = vst.msk [vmem:[%s201] sm:$0xf] %vm321, %v317
      %323 = vst.msk [vmem:[%s201 + $0x4] sm:$0xf] %vm321, %v318
      %p324 = scmp.lt.s32.totalorder %s18, 1
      %s325 = scalar_select %p324, %s18, 1
      %p326 = scmp.lt.s32.totalorder %s19, 0
      %s327 = scalar_select %p326, %s19, 0
      %s328 = smul.addr %s325, 2
      %s329 = sadd.s32 %s327, %s328
      %s330 = smul.addr %s329, 4
      %s331 = scalar_lea.vmem %s3, %s330
      // Predicated region
      $region33: #{discriminator_forward.6} parent=31 // pred_check
        %p332 = pneg %p116
      $region34: #{discriminator_forward.6} parent=31 // pred_check_branch
        %334 = sbr.rel (%p332) target = $region36
      $region35: #{discriminator_forward.6} parent=31 // pred_region
        _
      $region36: #{discriminator_forward.6} parent=31 // pred_fallthru
        _
    $region32: #{discriminator_forward.6} parent=5 // pred_fallthru
      _
    %p335 = scmp.le.s32.totalorder 2, %s9
    // Predicated region
    $region37: #{discriminator_forward.6} parent=5 // pred_check
      %p336 = pneg %p335
    $region38: #{discriminator_forward.6} parent=5 // pred_check_branch
      %338 = sbr.rel (%p336) target = $region40
    $region39: #{discriminator_forward.6} parent=5 // pred_region
      %s339 = ssub.s32 %s9, 2
      // Predicated region
      $region41: #{discriminator_forward.6} parent=39 // pred_check
        %p340 = pneg %p122
      $region42: #{discriminator_forward.6} parent=39 // pred_check_branch
        %342 = sbr.rel (%p340) target = $region44
      $region43: #{discriminator_forward.6} parent=39 // pred_region
        %p343 = scmp.lt.s32.totalorder %s20, 1
        %s344 = scalar_select %p343, %s20, 1
        %p345 = scmp.lt.s32.totalorder %s21, 0
        %s346 = scalar_select %p345, %s21, 0
        %s347 = smul.addr %s344, 2
        %s348 = sadd.s32 %s346, %s347
        %s349 = smul.addr %s348, 4
        %s350 = scalar_lea.vmem %s3, %s349
      $region44: #{discriminator_forward.6} parent=39 // pred_fallthru
        _
    $region40: #{discriminator_forward.6} parent=5 // pred_fallthru
      _
  $region6: #{discriminator_forward.6} parent=0 // loop_footer
    %s13 = sadd.s32 1, %s9
  $region7: #{discriminator_forward.6} parent=0 // loop_footer_branch
    %8 = sbr.rel target = $region3
  $region8: #{discriminator_forward.6} parent=0 // loop_exit
    _

// kernel: discriminator_forward.7
$region0: #{discriminator_forward.7}
  #allocation0 [shape = 'u32[]', space=smem, size = 0x4, offset = 0x4, fixed_abs, tag = 'smem constant byte address 0x4 - core index']
  #allocation1 [shape = 'u32[144,128]{1,0:T(1,128)}', space=vmem, size = 0x12000, scoped, tag = 'internal scratch']
  %s0 = inlined_call_operand.vmem [shape: bf16[2,144,16], index: 0, kind: input, shape index: {}]
  %s1 = inlined_call_operand.vmem [shape: bf16[32,144], index: 1, kind: input, shape index: {}]
  %s2 = inlined_call_operand.vmem [shape: f32[32,1], index: 2, kind: input, shape index: {}]
  %s3 = inlined_call_operand.vmem [shape: bf16[2,32,16], index: 3, kind: output, shape index: {}]
  %s4 = sld [smem:[#allocation0]]
  $region45: #{discriminator_forward.7} parent=0
    _
  %s6 = ssub.s32 1, %s4
  %s7 = scalar_select 0, %s6, %s4
  loop: start=0, step=1, limit=4
  $region2: #{discriminator_forward.7} parent=0 // loop_pre_header
    _
  $region3: #{discriminator_forward.7} parent=0 // loop_header
    %s9 = sphi 0, %s13
    %p10 = scmp.ge.s32.totalorder %s9, 4
    %s16 = sphi 0, %s28
    %s17 = sphi 0, %s24
    %s18 = sphi 0, %s16
    %s19 = sphi 0, %s17
    %s20 = sphi 0, %s18
    %s21 = sphi 0, %s19
    %s33 = sphi 0, %s35
    %s36 = sphi 0, %s33
    %s37 = sphi 0, %s36
    %s53 = sphi 0, %s37
    %s57 = sphi 0, %s57
    %s59 = sphi 0, %s57
    %s60 = sphi 0, %s59
    %s74 = sphi 0, %s60
    %s78 = sphi 0, %s78
    %s80 = sphi 0, %s78
    %s81 = sphi 0, %s80
    %s95 = sphi 0, %s81
    %s103 = sphi 0, %s105
    %s106 = sphi 0, %s103
    %s107 = sphi 0, %s106
    %s123 = sphi 0, %s107
  $region4: #{discriminator_forward.7} parent=0 // loop_header_branch
    %12 = sbr.rel (%p10) target = $region8
  $region5: #{discriminator_forward.7} parent=0 // loop_body
    %s14 = ssub.s32 %s9, 1
    %s15 = ssub.s32 %s9, 2
    %s22 = sadd.s32 1, %s17
    %p23 = scmp.ge.s32.totalorder %s22, 1
    %s24 = scalar_select %p23, 0, %s22
    %s25 = sadd.s32 1, %s16
    %s26 = scalar_select %p23, %s25, %s16
    %p27 = scmp.ge.s32.totalorder %s26, 2
    %s28 = scalar_select %p27, 0, %s26
    %s29 = ssub.s32 %s16, %s28
    %s30 = ssub.s32 %s17, %s24
    %s31 = sor.u32 %s29, %s30
    %p32 = scmp.eq.s32.totalorder %s31, 0
    %s34 = sadd.s32 %s33, 1
    %s35 = scalar_select %p32, %s33, %s34
    %p38 = pneg %p32
    %p39 = scmp.eq.s32.totalorder %s9, 1
    %p40 = por %p38, %p39
    %p41 = scmp.ne.s32.totalorder %s33, %s36
    %p42 = scmp.eq.s32.totalorder %s9, 0
    %p43 = por %p41, %p42
    %p44 = scmp.ne.s32.totalorder %s33, %s36
    %p45 = scmp.eq.s32.totalorder %s14, 1
    %p46 = por %p44, %p45
    %p47 = scmp.ne.s32.totalorder %s36, %s37
    %p48 = scmp.eq.s32.totalorder %s14, 0
    %p49 = por %p47, %p48
    %p50 = scmp.ne.s32.totalorder %s36, %s37
    %p51 = scmp.eq.s32.totalorder %s15, 1
    %p52 = por %p50, %p51
    %p54 = scmp.ne.s32.totalorder %s37, %s53
    %p55 = scmp.eq.s32.totalorder %s15, 0
    %p56 = por %p54, %p55
    %s58 = sadd.s32 %s57, 1
    %p61 = scmp.eq.s32.totalorder %s9, 1
    %p62 = scmp.ne.s32.totalorder %s57, %s59
    %p63 = scmp.eq.s32.totalorder %s9, 0
    %p64 = por %p62, %p63
    %p65 = scmp.ne.s32.totalorder %s57, %s59
    %p66 = scmp.eq.s32.totalorder %s14, 1
    %p67 = por %p65, %p66
    %p68 = scmp.ne.s32.totalorder %s59, %s60
    %p69 = scmp.eq.s32.totalorder %s14, 0
    %p70 = por %p68, %p69
    %p71 = scmp.ne.s32.totalorder %s59, %s60
    %p72 = scmp.eq.s32.totalorder %s15, 1
    %p73 = por %p71, %p72
    %p75 = scmp.ne.s32.totalorder %s60, %s74
    %p76 = scmp.eq.s32.totalorder %s15, 0
    %p77 = por %p75, %p76
    %s79 = sadd.s32 %s78, 1
    %p82 = scmp.eq.s32.totalorder %s9, 1
    %p83 = scmp.ne.s32.totalorder %s78, %s80
    %p84 = scmp.eq.s32.totalorder %s9, 0
    %p85 = por %p83, %p84
    %p86 = scmp.ne.s32.totalorder %s78, %s80
    %p87 = scmp.eq.s32.totalorder %s14, 1
    %p88 = por %p86, %p87
    %p89 = scmp.ne.s32.totalorder %s80, %s81
    %p90 = scmp.eq.s32.totalorder %s14, 0
    %p91 = por %p89, %p90
    %p92 = scmp.ne.s32.totalorder %s80, %s81
    %p93 = scmp.eq.s32.totalorder %s15, 1
    %p94 = por %p92, %p93
    %p96 = scmp.ne.s32.totalorder %s81, %s95
    %p97 = scmp.eq.s32.totalorder %s15, 0
    %p98 = por %p96, %p97
    %s99 = ssub.s32 %s16, %s28
    %s100 = ssub.s32 %s17, %s24
    %s101 = sor.u32 %s99, %s100
    %p102 = scmp.eq.s32.totalorder %s101, 0
    %s104 = sadd.s32 %s103, 1
    %s105 = scalar_select %p102, %s103, %s104
    %p108 = pneg %p102
    %p109 = scmp.eq.s32.totalorder %s9, 1
    %p110 = por %p108, %p109
    %p111 = scmp.ne.s32.totalorder %s103, %s106
    %p112 = scmp.eq.s32.totalorder %s9, 0
    %p113 = por %p111, %p112
    %p114 = scmp.ne.s32.totalorder %s103, %s106
    %p115 = scmp.eq.s32.totalorder %s14, 1
    %p116 = por %p114, %p115
    %p117 = scmp.ne.s32.totalorder %s106, %s107
    %p118 = scmp.eq.s32.totalorder %s14, 0
    %p119 = por %p117, %p118
    %p120 = scmp.ne.s32.totalorder %s106, %s107
    %p121 = scmp.eq.s32.totalorder %s15, 1
    %p122 = por %p120, %p121
    %p124 = scmp.ne.s32.totalorder %s107, %s123
    %p125 = scmp.eq.s32.totalorder %s15, 0
    %p126 = por %p124, %p125
    %p127 = scmp.le.s32.totalorder 1, %s9
    %p128 = scmp.lt.s32.totalorder %s9, 3
    %p129 = pnand %p127, %p128
    %p130 = pneg %p129
    // Predicated region
    $region9: #{discriminator_forward.7} parent=5 // pred_check
      _
    $region10: #{discriminator_forward.7} parent=5 // pred_check_branch
      %132 = sbr.rel (%p129) target = $region12
    $region11: #{discriminator_forward.7} parent=5 // pred_region
      %s133 = ssub.s32 %s9, 1
      // Predicated region
      $region13: #{discriminator_forward.7} parent=11 // pred_check
        %p134 = pneg %p70
      $region14: #{discriminator_forward.7} parent=11 // pred_check_branch
        %136 = sbr.rel (%p134) target = $region16
      $region15: #{discriminator_forward.7} parent=11 // pred_region
        _
      $region16: #{discriminator_forward.7} parent=11 // pred_fallthru
        _
      // Predicated region
      $region17: #{discriminator_forward.7} parent=11 // pred_check
        %p137 = pneg %p91
      $region18: #{discriminator_forward.7} parent=11 // pred_check_branch
        %139 = sbr.rel (%p137) target = $region20
      $region19: #{discriminator_forward.7} parent=11 // pred_region
        _
      $region20: #{discriminator_forward.7} parent=11 // pred_fallthru
        _
    $region12: #{discriminator_forward.7} parent=5 // pred_fallthru
      _
    %p140 = scmp.lt.s32.totalorder %s9, 2
    // Predicated region
    $region21: #{discriminator_forward.7} parent=5 // pred_check
      %p141 = pneg %p140
    $region22: #{discriminator_forward.7} parent=5 // pred_check_branch
      %143 = sbr.rel (%p141) target = $region24
    $region23: #{discriminator_forward.7} parent=5 // pred_region
      // Predicated region
      $region25: #{discriminator_forward.7} parent=23 // pred_check
        %p144 = pneg %p43
      $region26: #{discriminator_forward.7} parent=23 // pred_check_branch
        %146 = sbr.rel (%p144) target = $region28
      $region27: #{discriminator_forward.7} parent=23 // pred_region
        %p147 = scmp.lt.s32.totalorder %s16, 1
        %s148 = scalar_select %p147, %s16, 1
        %p149 = scmp.lt.s32.totalorder %s17, 0
        %s150 = scalar_select %p149, %s17, 0
        %s151 = smul.addr %s148, 18
        %s152 = sadd.s32 %s150, %s151
        %s153 = smul.addr %s152, 4
        %s154 = scalar_lea.vmem %s0, %s153
      $region28: #{discriminator_forward.7} parent=23 // pred_fallthru
        _
    $region24: #{discriminator_forward.7} parent=5 // pred_fallthru
      _
    %p155 = scmp.le.s32.totalorder 1, %s9
    %p156 = scmp.lt.s32.totalorder %s9, 3
    %p157 = pnand %p155, %p156
    %p158 = pneg %p157
    // Predicated region
    $region29: #{discriminator_forward.7} parent=5 // pred_check
      _
    $region30: #{discriminator_forward.7} parent=5 // pred_check_branch
      %160 = sbr.rel (%p157) target = $region32
    $region31: #{discriminator_forward.7} parent=5 // pred_region
      %s161 = ssub.s32 %s9, 1
      %p162 = scmp.lt.s32.totalorder %s18, 1
      %s163 = scalar_select %p162, %s18, 1
      %p164 = scmp.lt.s32.totalorder %s19, 0
      %s165 = scalar_select %p164, %s19, 0
      %s166 = smul.addr %s163, 18
      %s167 = sadd.s32 %s165, %s166
      %s168 = smul.addr %s167, 4
      %s169 = scalar_lea.vmem %s0, %s168
      %p170 = pneg %p49
      %p171 = pneg %p46
      %p172 = pneg %p70
      %p173 = pneg %p67
      %p174 = pneg %p91
      %p175 = pneg %p88
      %p176 = pneg %p119
      %p177 = pneg %p116
      %p178 = scmp.lt.s32.totalorder %s18, 1
      %s179 = scalar_select %p178, %s18, 1
      %p180 = scmp.lt.s32.totalorder %s19, 0
      %s181 = scalar_select %p180, %s19, 0
      %s182 = smul.addr %s179, 4
      %s183 = sadd.s32 %s181, %s182
      %s184 = smul.addr %s183, 4
      %s185 = scalar_lea.vmem %s3, %s184
      %p186 = scmp.lt.s32.totalorder %s18, 1
      %s187 = scalar_select %p186, %s18, 1
      %p188 = scmp.lt.s32.totalorder %s19, 0
      %s189 = scalar_select %p188, %s19, 0
      %s190 = smul.addr %s187, 18
      %s191 = sadd.s32 %s189, %s190
      %s192 = smul.addr %s191, 4
      %s193 = scalar_lea.vmem %s0, %s192
      %p194 = scmp.lt.s32.totalorder %s18, 1
      %s195 = scalar_select %p194, %s18, 1
      %p196 = scmp.lt.s32.totalorder %s19, 0
      %s197 = scalar_select %p196, %s19, 0
      %s198 = smul.addr %s195, 4
      %s199 = sadd.s32 %s197, %s198
      %s200 = smul.addr %s199, 4
      %s201 = scalar_lea.vmem %s3, %s200
      %v203 = vld [vmem:[%s1] sm:$0xff]
      %v204 = vld [vmem:[%s1 + $0x8] sm:$0xff]
      %v205 = vld [vmem:[%s1 + $0x10] sm:$0xff]
      %v206 = vld [vmem:[%s1 + $0x18] sm:$0xff]
      %v207 = vld [vmem:[%s193] sm:$0xf]
      %v208 = vld [vmem:[%s193 + $0x4] sm:$0xf]
      %v209 = vld [vmem:[%s193 + $0x8] sm:$0xf]
      %v210 = vld [vmem:[%s193 + $0xc] sm:$0xf]
      %v211 = vld [vmem:[%s193 + $0x10] sm:$0xf]
      %v212 = vld [vmem:[%s193 + $0x14] sm:$0xf]
      %v213 = vld [vmem:[%s193 + $0x18] sm:$0xf]
      %v214 = vld [vmem:[%s193 + $0x1c] sm:$0xf]
      %v215 = vld [vmem:[%s193 + $0x20] sm:$0xf]
      %v216 = vld [vmem:[%s193 + $0x24] sm:$0xf]
      %v217 = vld [vmem:[%s193 + $0x28] sm:$0xf]
      %v218 = vld [vmem:[%s193 + $0x2c] sm:$0xf]
      %v219 = vld [vmem:[%s193 + $0x30] sm:$0xf]
      %v220 = vld [vmem:[%s193 + $0x34] sm:$0xf]
      %v221 = vld [vmem:[%s193 + $0x38] sm:$0xf]
      %v222 = vld [vmem:[%s193 + $0x3c] sm:$0xf]
      %v223 = vld [vmem:[%s193 + $0x40] sm:$0xf]
      %v224 = vld [vmem:[%s193 + $0x44] sm:$0xf]
      %v225 = vld [vmem:[%s2] sm:$0xff]
      %v226 = vld [vmem:[%s2 + $0x8] sm:$0xff]
      %v227 = vld [vmem:[%s2 + $0x10] sm:$0xff]
      %v228 = vld [vmem:[%s2 + $0x18] sm:$0xff]
      %230 = vset.pattern.permute.xlu0 0
      %231 = vperm.xlu0 %230, %v225
      %v232 = vpop.permute.xlu0 %231
      %235 = vset.pattern.permute.xlu0 0
      %236 = vperm.xlu0 %235, %v226
      %v237 = vpop.permute.xlu0 %236
      %240 = vset.pattern.permute.xlu0 0
      %241 = vperm.xlu0 %240, %v227
      %v242 = vpop.permute.xlu0 %241
      %245 = vset.pattern.permute.xlu0 0
      %246 = vperm.xlu0 %245, %v228
      %v247 = vpop.permute.xlu0 %246
      %v253 = vunpack.c.l.b16 %v203
      %v254 = vunpack.c.h.b16 %v203
      %v255 = vunpack.c.l.b16 %v204
      %v256 = vunpack.c.h.b16 %v204
      %v257 = vunpack.c.l.b16 %v205
      %v258 = vunpack.c.h.b16 %v205
      %v259 = vunpack.c.l.b16 %v206
      %v260 = vunpack.c.h.b16 %v206
      %v261 = vpack.c.b16 %v255, %v253
      %v262 = vpack.c.b16 %v256, %v254
      %v263 = vpack.c.b16 %v259, %v257
      %v264 = vpack.c.b16 %v260, %v258
      %v285 = vunpack.c.l.b16 %v207
      %v286 = vunpack.c.l.b16 %v208
      %v287 = vunpack.c.l.b16 %v209
      %v288 = vunpack.c.l.b16 %v210
      %v289 = vunpack.c.l.b16 %v211
      %v290 = vunpack.c.l.b16 %v212
      %v291 = vunpack.c.l.b16 %v213
      %v292 = vunpack.c.l.b16 %v214
      %v293 = vunpack.c.l.b16 %v215
      %v294 = vunpack.c.l.b16 %v216
      %v295 = vunpack.c.l.b16 %v217
      %v296 = vunpack.c.l.b16 %v218
      %v297 = vunpack.c.l.b16 %v219
      %v298 = vunpack.c.l.b16 %v220
      %v299 = vunpack.c.l.b16 %v221
      %v300 = vunpack.c.l.b16 %v222
      %v301 = vunpack.c.l.b16 %v223
      %v302 = vunpack.c.l.b16 %v224
      %v303 = vpack.c.b16 %v286, %v285
      %v304 = vpack.c.b16 %v288, %v287
      %v305 = vpack.c.b16 %v290, %v289
      %v306 = vpack.c.b16 %v292, %v291
      %v307 = vpack.c.b16 %v294, %v293
      %v308 = vpack.c.b16 %v296, %v295
      %v309 = vpack.c.b16 %v298, %v297
      %v310 = vpack.c.b16 %v300, %v299
      %v311 = vpack.c.b16 %v302, %v301
      %vm321 = vcmask 130048
      %v323 = vsel %vm321, %v262, 0
      %v326 = vsel %vm321, %v264, 0
      %328 = vmatprep.subr.bf16.mxu0 0
      %329 = vmatpush1.bf16.msra.mxu0 %v303
      %330 = vmatprep.subr.bf16.mxu0 0
      %331 = vmatpush1.bf16.msra.mxu0 %v304
      %332 = vmatprep.subr.bf16.mxu0 0
      %333 = vmatpush1.bf16.msra.mxu0 %v305
      %334 = vmatprep.subr.bf16.mxu0 0
      %335 = vmatpush1.bf16.msra.mxu0 %v306
      %336 = vmatprep.subr.bf16.mxu0 0
      %337 = vmatpush1.bf16.msra.mxu0 %v307
      %338 = vmatprep.subr.bf16.mxu0 0
      %339 = vmatpush1.bf16.msra.mxu0 %v308
      %340 = vmatprep.subr.bf16.mxu0 0
      %341 = vmatpush1.bf16.msra.mxu0 %v309
      %342 = vmatprep.subr.bf16.mxu0 0
      %343 = vmatpush1.bf16.msra.mxu0 %v310
      %344 = vmatprep.subr.bf16.mxu0 0
      %345 = vmatpush1.bf16.msra.mxu0 %v311
      %346 = vmatprep.subr.bf16.mxu0 0
      %347 = vmatpush1.bf16.msra.mxu0 0
      %348 = vmatprep.subr.bf16.mxu0 0
      %349 = vmatpush1.bf16.msra.mxu0 0
      %350 = vmatprep.subr.bf16.mxu0 0
      %351 = vmatpush1.bf16.msra.mxu0 0
      %352 = vmatprep.subr.bf16.mxu0 0
      %353 = vmatpush1.bf16.msra.mxu0 0
      %354 = vmatprep.subr.bf16.mxu0 0
      %355 = vmatpush1.bf16.msra.mxu0 0
      %356 = vmatprep.subr.bf16.mxu0 0
      %357 = vmatpush1.bf16.msra.mxu0 0
      %358 = vmatprep.subr.bf16.mxu0 0
      %359 = vmatpush1.bf16.msra.mxu0 0
      %360 = vmatprep.mubr.bf16.mxu0 %v323
      %361 = vmatmul.mubr.bf16.gmra.mrb[0].mxu0 %v261
      %v362 = vpop.f32.mrb[0].mxu0
      %v363 = vadd.f32 %v232, %v362
      %v364 = vpop.f32.mrb[0].mxu0
      %v365 = vpop.f32.mrb[0].mxu0
      %v366 = vadd.f32 %v237, %v365
      %v367 = vpop.f32.mrb[0].mxu0
      %368 = vmatprep.mubr.bf16.mxu0 %v326
      %369 = vmatmul.mubr.bf16.gmra.mrb[0].mxu0 %v263
      %v370 = vpop.f32.mrb[0].mxu0
      %v371 = vadd.f32 %v242, %v370
      %v372 = vpop.f32.mrb[0].mxu0
      %v373 = vpop.f32.mrb[0].mxu0
      %v374 = vadd.f32 %v247, %v373
      %v375 = vpop.f32.mrb[0].mxu0
      %376 = vdwg.mxu0
      %vm377 = vcmp.gt.f32.partialorder %v363, 0.0
      %vm378 = vcmp.gt.f32.partialorder %v366, 0.0
      %vm379 = vcmp.gt.f32.partialorder %v371, 0.0
      %vm380 = vcmp.gt.f32.partialorder %v374, 0.0
      %v381 = vmul.f32 %v363, 0.2
      %v382 = vmul.f32 %v366, 0.2
      %v383 = vmul.f32 %v371, 0.2
      %v384 = vmul.f32 %v374, 0.2
      %v385 = vsel %vm377, %v363, %v381
      %v386 = vsel %vm378, %v366, %v382
      %v387 = vsel %vm379, %v371, %v383
      %v388 = vsel %vm380, %v374, %v384
      %v389 = vpack.c.bf16 %v386, %v385
      %v390 = vpack.c.bf16 %v388, %v387
      %v393 = vunpack.c.l.b16 %v389
      %v394 = vunpack.c.h.b16 %v389
      %v395 = vunpack.c.l.b16 %v390
      %v396 = vunpack.c.h.b16 %v390
      %v397 = vpack.c.b16 %v393, %v393
      %v398 = vpack.c.b16 %v394, %v394
      %v399 = vpack.c.b16 %v395, %v395
      %v400 = vpack.c.b16 %v396, %v396
      %vm405 = vcmask 125952
      %406 = vst.msk [vmem:[%s201] sm:$0xf] %vm405, %v397
      %407 = vst.msk [vmem:[%s201 + $0x4] sm:$0xf] %vm405, %v398
      %408 = vst.msk [vmem:[%s201 + $0x8] sm:$0xf] %vm405, %v399
      %409 = vst.msk [vmem:[%s201 + $0xc] sm:$0xf] %vm405, %v400
      %p410 = scmp.lt.s32.totalorder %s18, 1
      %s411 = scalar_select %p410, %s18, 1
      %p412 = scmp.lt.s32.totalorder %s19, 0
      %s413 = scalar_select %p412, %s19, 0
      %s414 = smul.addr %s411, 4
      %s415 = sadd.s32 %s413, %s414
      %s416 = smul.addr %s415, 4
      %s417 = scalar_lea.vmem %s3, %s416
      // Predicated region
      $region33: #{discriminator_forward.7} parent=31 // pred_check
        %p418 = pneg %p116
      $region34: #{discriminator_forward.7} parent=31 // pred_check_branch
        %420 = sbr.rel (%p418) target = $region36
      $region35: #{discriminator_forward.7} parent=31 // pred_region
        _
      $region36: #{discriminator_forward.7} parent=31 // pred_fallthru
        _
    $region32: #{discriminator_forward.7} parent=5 // pred_fallthru
      _
    %p421 = scmp.le.s32.totalorder 2, %s9
    // Predicated region
    $region37: #{discriminator_forward.7} parent=5 // pred_check
      %p422 = pneg %p421
    $region38: #{discriminator_forward.7} parent=5 // pred_check_branch
      %424 = sbr.rel (%p422) target = $region40
    $region39: #{discriminator_forward.7} parent=5 // pred_region
      %s425 = ssub.s32 %s9, 2
      // Predicated region
      $region41: #{discriminator_forward.7} parent=39 // pred_check
        %p426 = pneg %p122
      $region42: #{discriminator_forward.7} parent=39 // pred_check_branch
        %428 = sbr.rel (%p426) target = $region44
      $region43: #{discriminator_forward.7} parent=39 // pred_region
        %p429 = scmp.lt.s32.totalorder %s20, 1
        %s430 = scalar_select %p429, %s20, 1
        %p431 = scmp.lt.s32.totalorder %s21, 0
        %s432 = scalar_select %p431, %s21, 0
        %s433 = smul.addr %s430, 4
        %s434 = sadd.s32 %s432, %s433
        %s435 = smul.addr %s434, 4
        %s436 = scalar_lea.vmem %s3, %s435
      $region44: #{discriminator_forward.7} parent=39 // pred_fallthru
        _
    $region40: #{discriminator_forward.7} parent=5 // pred_fallthru
      _
  $region6: #{discriminator_forward.7} parent=0 // loop_footer
    %s13 = sadd.s32 1, %s9
  $region7: #{discriminator_forward.7} parent=0 // loop_footer_branch
    %8 = sbr.rel target = $region3
  $region8: #{discriminator_forward.7} parent=0 // loop_exit
    _

// kernel: discriminator_forward.9
$region0: #{discriminator_forward.9}
  #allocation0 [shape = 'u32[]', space=smem, size = 0x4, offset = 0x4, fixed_abs, tag = 'smem constant byte address 0x4 - core index']
  #allocation1 [shape = 'u32[144,128]{1,0:T(1,128)}', space=vmem, size = 0x12000, scoped, tag = 'internal scratch']
  #allocation2 [shape = 'f32[1,1]{1,0:T(1,128)S(1)}', space=vmem, size = 0x200, scoped, tag = 'scoped memory for discriminator_forward.9']
  %s0 = inlined_call_operand.vmem [shape: bf16[2,72,4], index: 0, kind: input, shape index: {}]
  %s1 = inlined_call_operand.vmem [shape: bf16[1,72], index: 1, kind: input, shape index: {}]
  %s2 = inlined_call_operand.<no memory space> [shape: f32[1,1], index: 2, kind: input, shape index: {}]
  %s3 = inlined_call_operand.vmem [shape: f32[2,1,4], index: 3, kind: output, shape index: {}]
  %s4 = sld [smem:[#allocation0]]
  $region45: #{discriminator_forward.9} parent=0
    _
  %s6 = ssub.s32 1, %s4
  %s7 = scalar_select 0, %s6, %s4
  %v8 = vstv %s2
  %9 = vst [vmem:[#allocation2] sm:$0x1] %v8
  loop: start=0, step=1, limit=4
  $region2: #{discriminator_forward.9} parent=0 // loop_pre_header
    _
  $region3: #{discriminator_forward.9} parent=0 // loop_header
    %s11 = sphi 0, %s15
    %p12 = scmp.ge.s32.totalorder %s11, 4
    %s18 = sphi 0, %s30
    %s19 = sphi 0, %s26
    %s20 = sphi 0, %s18
    %s21 = sphi 0, %s19
    %s22 = sphi 0, %s20
    %s23 = sphi 0, %s21
    %s35 = sphi 0, %s37
    %s38 = sphi 0, %s35
    %s39 = sphi 0, %s38
    %s55 = sphi 0, %s39
    %s59 = sphi 0, %s59
    %s61 = sphi 0, %s59
    %s62 = sphi 0, %s61
    %s76 = sphi 0, %s62
    %s80 = sphi 0, %s80
    %s82 = sphi 0, %s80
    %s83 = sphi 0, %s82
    %s97 = sphi 0, %s83
    %s105 = sphi 0, %s107
    %s108 = sphi 0, %s105
    %s109 = sphi 0, %s108
    %s125 = sphi 0, %s109
  $region4: #{discriminator_forward.9} parent=0 // loop_header_branch
    %14 = sbr.rel (%p12) target = $region8
  $region5: #{discriminator_forward.9} parent=0 // loop_body
    %s16 = ssub.s32 %s11, 1
    %s17 = ssub.s32 %s11, 2
    %s24 = sadd.s32 1, %s19
    %p25 = scmp.ge.s32.totalorder %s24, 1
    %s26 = scalar_select %p25, 0, %s24
    %s27 = sadd.s32 1, %s18
    %s28 = scalar_select %p25, %s27, %s18
    %p29 = scmp.ge.s32.totalorder %s28, 2
    %s30 = scalar_select %p29, 0, %s28
    %s31 = ssub.s32 %s18, %s30
    %s32 = ssub.s32 %s19, %s26
    %s33 = sor.u32 %s31, %s32
    %p34 = scmp.eq.s32.totalorder %s33, 0
    %s36 = sadd.s32 %s35, 1
    %s37 = scalar_select %p34, %s35, %s36
    %p40 = pneg %p34
    %p41 = scmp.eq.s32.totalorder %s11, 1
    %p42 = por %p40, %p41
    %p43 = scmp.ne.s32.totalorder %s35, %s38
    %p44 = scmp.eq.s32.totalorder %s11, 0
    %p45 = por %p43, %p44
    %p46 = scmp.ne.s32.totalorder %s35, %s38
    %p47 = scmp.eq.s32.totalorder %s16, 1
    %p48 = por %p46, %p47
    %p49 = scmp.ne.s32.totalorder %s38, %s39
    %p50 = scmp.eq.s32.totalorder %s16, 0
    %p51 = por %p49, %p50
    %p52 = scmp.ne.s32.totalorder %s38, %s39
    %p53 = scmp.eq.s32.totalorder %s17, 1
    %p54 = por %p52, %p53
    %p56 = scmp.ne.s32.totalorder %s39, %s55
    %p57 = scmp.eq.s32.totalorder %s17, 0
    %p58 = por %p56, %p57
    %s60 = sadd.s32 %s59, 1
    %p63 = scmp.eq.s32.totalorder %s11, 1
    %p64 = scmp.ne.s32.totalorder %s59, %s61
    %p65 = scmp.eq.s32.totalorder %s11, 0
    %p66 = por %p64, %p65
    %p67 = scmp.ne.s32.totalorder %s59, %s61
    %p68 = scmp.eq.s32.totalorder %s16, 1
    %p69 = por %p67, %p68
    %p70 = scmp.ne.s32.totalorder %s61, %s62
    %p71 = scmp.eq.s32.totalorder %s16, 0
    %p72 = por %p70, %p71
    %p73 = scmp.ne.s32.totalorder %s61, %s62
    %p74 = scmp.eq.s32.totalorder %s17, 1
    %p75 = por %p73, %p74
    %p77 = scmp.ne.s32.totalorder %s62, %s76
    %p78 = scmp.eq.s32.totalorder %s17, 0
    %p79 = por %p77, %p78
    %s81 = sadd.s32 %s80, 1
    %p84 = scmp.eq.s32.totalorder %s11, 1
    %p85 = scmp.ne.s32.totalorder %s80, %s82
    %p86 = scmp.eq.s32.totalorder %s11, 0
    %p87 = por %p85, %p86
    %p88 = scmp.ne.s32.totalorder %s80, %s82
    %p89 = scmp.eq.s32.totalorder %s16, 1
    %p90 = por %p88, %p89
    %p91 = scmp.ne.s32.totalorder %s82, %s83
    %p92 = scmp.eq.s32.totalorder %s16, 0
    %p93 = por %p91, %p92
    %p94 = scmp.ne.s32.totalorder %s82, %s83
    %p95 = scmp.eq.s32.totalorder %s17, 1
    %p96 = por %p94, %p95
    %p98 = scmp.ne.s32.totalorder %s83, %s97
    %p99 = scmp.eq.s32.totalorder %s17, 0
    %p100 = por %p98, %p99
    %s101 = ssub.s32 %s18, %s30
    %s102 = ssub.s32 %s19, %s26
    %s103 = sor.u32 %s101, %s102
    %p104 = scmp.eq.s32.totalorder %s103, 0
    %s106 = sadd.s32 %s105, 1
    %s107 = scalar_select %p104, %s105, %s106
    %p110 = pneg %p104
    %p111 = scmp.eq.s32.totalorder %s11, 1
    %p112 = por %p110, %p111
    %p113 = scmp.ne.s32.totalorder %s105, %s108
    %p114 = scmp.eq.s32.totalorder %s11, 0
    %p115 = por %p113, %p114
    %p116 = scmp.ne.s32.totalorder %s105, %s108
    %p117 = scmp.eq.s32.totalorder %s16, 1
    %p118 = por %p116, %p117
    %p119 = scmp.ne.s32.totalorder %s108, %s109
    %p120 = scmp.eq.s32.totalorder %s16, 0
    %p121 = por %p119, %p120
    %p122 = scmp.ne.s32.totalorder %s108, %s109
    %p123 = scmp.eq.s32.totalorder %s17, 1
    %p124 = por %p122, %p123
    %p126 = scmp.ne.s32.totalorder %s109, %s125
    %p127 = scmp.eq.s32.totalorder %s17, 0
    %p128 = por %p126, %p127
    %p129 = scmp.le.s32.totalorder 1, %s11
    %p130 = scmp.lt.s32.totalorder %s11, 3
    %p131 = pnand %p129, %p130
    %p132 = pneg %p131
    // Predicated region
    $region9: #{discriminator_forward.9} parent=5 // pred_check
      _
    $region10: #{discriminator_forward.9} parent=5 // pred_check_branch
      %134 = sbr.rel (%p131) target = $region12
    $region11: #{discriminator_forward.9} parent=5 // pred_region
      %s135 = ssub.s32 %s11, 1
      // Predicated region
      $region13: #{discriminator_forward.9} parent=11 // pred_check
        %p136 = pneg %p72
      $region14: #{discriminator_forward.9} parent=11 // pred_check_branch
        %138 = sbr.rel (%p136) target = $region16
      $region15: #{discriminator_forward.9} parent=11 // pred_region
        _
      $region16: #{discriminator_forward.9} parent=11 // pred_fallthru
        _
      // Predicated region
      $region17: #{discriminator_forward.9} parent=11 // pred_check
        %p139 = pneg %p93
      $region18: #{discriminator_forward.9} parent=11 // pred_check_branch
        %141 = sbr.rel (%p139) target = $region20
      $region19: #{discriminator_forward.9} parent=11 // pred_region
        _
      $region20: #{discriminator_forward.9} parent=11 // pred_fallthru
        _
    $region12: #{discriminator_forward.9} parent=5 // pred_fallthru
      _
    %p142 = scmp.lt.s32.totalorder %s11, 2
    // Predicated region
    $region21: #{discriminator_forward.9} parent=5 // pred_check
      %p143 = pneg %p142
    $region22: #{discriminator_forward.9} parent=5 // pred_check_branch
      %145 = sbr.rel (%p143) target = $region24
    $region23: #{discriminator_forward.9} parent=5 // pred_region
      // Predicated region
      $region25: #{discriminator_forward.9} parent=23 // pred_check
        %p146 = pneg %p45
      $region26: #{discriminator_forward.9} parent=23 // pred_check_branch
        %148 = sbr.rel (%p146) target = $region28
      $region27: #{discriminator_forward.9} parent=23 // pred_region
        %p149 = scmp.lt.s32.totalorder %s18, 1
        %s150 = scalar_select %p149, %s18, 1
        %p151 = scmp.lt.s32.totalorder %s19, 0
        %s152 = scalar_select %p151, %s19, 0
        %s153 = smul.addr %s150, 9
        %s154 = sadd.s32 %s152, %s153
        %s155 = smul.addr %s154, 4
        %s156 = scalar_lea.vmem %s0, %s155
      $region28: #{discriminator_forward.9} parent=23 // pred_fallthru
        _
    $region24: #{discriminator_forward.9} parent=5 // pred_fallthru
      _
    %p157 = scmp.le.s32.totalorder 1, %s11
    %p158 = scmp.lt.s32.totalorder %s11, 3
    %p159 = pnand %p157, %p158
    %p160 = pneg %p159
    // Predicated region
    $region29: #{discriminator_forward.9} parent=5 // pred_check
      _
    $region30: #{discriminator_forward.9} parent=5 // pred_check_branch
      %162 = sbr.rel (%p159) target = $region32
    $region31: #{discriminator_forward.9} parent=5 // pred_region
      %s163 = ssub.s32 %s11, 1
      %p164 = scmp.lt.s32.totalorder %s20, 1
      %s165 = scalar_select %p164, %s20, 1
      %p166 = scmp.lt.s32.totalorder %s21, 0
      %s167 = scalar_select %p166, %s21, 0
      %s168 = smul.addr %s165, 9
      %s169 = sadd.s32 %s167, %s168
      %s170 = smul.addr %s169, 4
      %s171 = scalar_lea.vmem %s0, %s170
      %p172 = pneg %p51
      %p173 = pneg %p48
      %p174 = pneg %p72
      %p175 = pneg %p69
      %p176 = pneg %p93
      %p177 = pneg %p90
      %p178 = pneg %p121
      %p179 = pneg %p118
      %p180 = scmp.lt.s32.totalorder %s20, 1
      %s181 = scalar_select %p180, %s20, 1
      %p182 = scmp.lt.s32.totalorder %s21, 0
      %s183 = scalar_select %p182, %s21, 0
      %s184 = sadd.s32 %s183, %s181
      %s185 = scalar_lea.vmem %s3, %s184
      %p186 = scmp.lt.s32.totalorder %s20, 1
      %s187 = scalar_select %p186, %s20, 1
      %p188 = scmp.lt.s32.totalorder %s21, 0
      %s189 = scalar_select %p188, %s21, 0
      %s190 = smul.addr %s187, 9
      %s191 = sadd.s32 %s189, %s190
      %s192 = smul.addr %s191, 4
      %s193 = scalar_lea.vmem %s0, %s192
      %p194 = scmp.lt.s32.totalorder %s20, 1
      %s195 = scalar_select %p194, %s20, 1
      %p196 = scmp.lt.s32.totalorder %s21, 0
      %s197 = scalar_select %p196, %s21, 0
      %s198 = sadd.s32 %s197, %s195
      %s199 = scalar_lea.vmem %s3, %s198
      %v201 = vld [vmem:[%s1] sm:$0x1]
      %v202 = vld [vmem:[%s193] sm:$0xf]
      %v203 = vld [vmem:[%s193 + $0x4] sm:$0xf]
      %v204 = vld [vmem:[%s193 + $0x8] sm:$0xf]
      %v205 = vld [vmem:[%s193 + $0xc] sm:$0xf]
      %v206 = vld [vmem:[%s193 + $0x10] sm:$0xf]
      %v207 = vld [vmem:[%s193 + $0x14] sm:$0xf]
      %v208 = vld [vmem:[%s193 + $0x18] sm:$0xf]
      %v209 = vld [vmem:[%s193 + $0x1c] sm:$0xf]
      %v210 = vld [vmem:[%s193 + $0x20] sm:$0xf]
      %v211 = vld [vmem:[#allocation2] sm:$0x1]
      %213 = vset.pattern.permute.xlu0 0
      %214 = vperm.xlu0 %213, %v211
      %v215 = vpop.permute.xlu0 %214
      %v217 = vlaneseq
      %v218 = vshrl.u32 %v217, 7
      %v219 = vsub.s32 0, %v218
      %v220 = vrot.slane %v215, %v219
      %v230 = vunpack.c.l.b16 %v202
      %v231 = vunpack.c.l.b16 %v203
      %v232 = vunpack.c.l.b16 %v204
      %v233 = vunpack.c.l.b16 %v205
      %v234 = vunpack.c.l.b16 %v206
      %v235 = vunpack.c.l.b16 %v207
      %v236 = vunpack.c.l.b16 %v208
      %v237 = vunpack.c.l.b16 %v209
      %v238 = vunpack.c.l.b16 %v210
      %v239 = vpack.c.b16 %v231, %v230
      %v240 = vpack.c.b16 %v233, %v232
      %v241 = vpack.c.b16 %v235, %v234
      %v242 = vpack.c.b16 %v237, %v236
      %v243 = vpack.c.b16 %v238, %v238
      %vm248 = vcmask 588800
      %v250 = vsel %vm248, %v201, 0
      %vm252 = vcmask 1043456
      %v254 = vsel %vm252, %v243, 0
      %256 = vmatprep.subr.bf16.mxu0 0
      %257 = vmatpush1.bf16.msra.mxu0 %v239
      %258 = vmatprep.subr.bf16.mxu0 0
      %259 = vmatpush1.bf16.msra.mxu0 %v240
      %260 = vmatprep.subr.bf16.mxu0 0
      %261 = vmatpush1.bf16.msra.mxu0 %v241
      %262 = vmatprep.subr.bf16.mxu0 0
      %263 = vmatpush1.bf16.msra.mxu0 %v242
      %264 = vmatprep.subr.bf16.mxu0 0
      %265 = vmatpush1.bf16.msra.mxu0 %v254
      %266 = vmatprep.subr.bf16.mxu0 0
      %267 = vmatpush1.bf16.msra.mxu0 0
      %268 = vmatprep.subr.bf16.mxu0 0
      %269 = vmatpush1.bf16.msra.mxu0 0
      %270 = vmatprep.subr.bf16.mxu0 0
      %271 = vmatpush1.bf16.msra.mxu0 0
      %272 = vmatprep.subr.bf16.mxu0 0
      %273 = vmatpush1.bf16.msra.mxu0 0
      %274 = vmatprep.subr.bf16.mxu0 0
      %275 = vmatpush1.bf16.msra.mxu0 0
      %276 = vmatprep.subr.bf16.mxu0 0
      %277 = vmatpush1.bf16.msra.mxu0 0
      %278 = vmatprep.subr.bf16.mxu0 0
      %279 = vmatpush1.bf16.msra.mxu0 0
      %280 = vmatprep.subr.bf16.mxu0 0
      %281 = vmatpush1.bf16.msra.mxu0 0
      %282 = vmatprep.subr.bf16.mxu0 0
      %283 = vmatpush1.bf16.msra.mxu0 0
      %284 = vmatprep.subr.bf16.mxu0 0
      %285 = vmatpush1.bf16.msra.mxu0 0
      %286 = vmatprep.subr.bf16.mxu0 0
      %287 = vmatpush1.bf16.msra.mxu0 0
      %288 = vmatprep.mubr.bf16.mxu0 0
      %289 = vmatmul.mubr.bf16.gmra.mrb[0].mxu0 %v250
      %v290 = vpop.f32.mrb[0].mxu0
      %v291 = vadd.f32 %v220, %v290
      %v292 = vpop.f32.mrb[0].mxu0
      %v293 = vpop.f32.mrb[0].mxu0
      %v294 = vpop.f32.mrb[0].mxu0
      %295 = vdwg.mxu0
      %v296 = vsub.f32 0.0, %v291
      %v297 = vmul.f32 %v296, 1.442695
      %v298 = vpow.pop %v297
      %v299 = vadd.f32 %v298, 1.0
      %v300 = vrcp.pop %v299
      %v301 = vmul.f32 1.0, %v300
      %vm302 = vcmask 24576
      %303 = vst.msk [vmem:[%s199] sm:$0x1] %vm302, %v301
      %p304 = scmp.lt.s32.totalorder %s20, 1
      %s305 = scalar_select %p304, %s20, 1
      %p306 = scmp.lt.s32.totalorder %s21, 0
      %s307 = scalar_select %p306, %s21, 0
      %s308 = sadd.s32 %s307, %s305
      %s309 = scalar_lea.vmem %s3, %s308
      // Predicated region
      $region33: #{discriminator_forward.9} parent=31 // pred_check
        %p310 = pneg %p118
      $region34: #{discriminator_forward.9} parent=31 // pred_check_branch
        %312 = sbr.rel (%p310) target = $region36
      $region35: #{discriminator_forward.9} parent=31 // pred_region
        _
      $region36: #{discriminator_forward.9} parent=31 // pred_fallthru
        _
    $region32: #{discriminator_forward.9} parent=5 // pred_fallthru
      _
    %p313 = scmp.le.s32.totalorder 2, %s11
    // Predicated region
    $region37: #{discriminator_forward.9} parent=5 // pred_check
      %p314 = pneg %p313
    $region38: #{discriminator_forward.9} parent=5 // pred_check_branch
      %316 = sbr.rel (%p314) target = $region40
    $region39: #{discriminator_forward.9} parent=5 // pred_region
      %s317 = ssub.s32 %s11, 2
      // Predicated region
      $region41: #{discriminator_forward.9} parent=39 // pred_check
        %p318 = pneg %p124
      $region42: #{discriminator_forward.9} parent=39 // pred_check_branch
        %320 = sbr.rel (%p318) target = $region44
      $region43: #{discriminator_forward.9} parent=39 // pred_region
        %p321 = scmp.lt.s32.totalorder %s22, 1
        %s322 = scalar_select %p321, %s22, 1
        %p323 = scmp.lt.s32.totalorder %s23, 0
        %s324 = scalar_select %p323, %s23, 0
        %s325 = sadd.s32 %s324, %s322
        %s326 = scalar_lea.vmem %s3, %s325
      $region44: #{discriminator_forward.9} parent=39 // pred_fallthru
        _
    $region40: #{discriminator_forward.9} parent=5 // pred_fallthru
      _
  $region6: #{discriminator_forward.9} parent=0 // loop_footer
    %s15 = sadd.s32 1, %s11
  $region7: #{discriminator_forward.9} parent=0 // loop_footer_branch
    %10 = sbr.rel target = $region3
  $region8: #{discriminator_forward.9} parent=0 // loop_exit
    _

// kernel: discriminator_forward.8
$region0: #{discriminator_forward.8}
  #allocation0 [shape = 'u32[]', space=smem, size = 0x4, offset = 0x4, fixed_abs, tag = 'smem constant byte address 0x4 - core index']
  #allocation1 [shape = 'u32[144,128]{1,0:T(1,128)}', space=vmem, size = 0x12000, scoped, tag = 'internal scratch']
  %s0 = inlined_call_operand.vmem [shape: bf16[2,288,4], index: 0, kind: input, shape index: {}]
  %s1 = inlined_call_operand.vmem [shape: bf16[8,288], index: 1, kind: input, shape index: {}]
  %s2 = inlined_call_operand.vmem [shape: f32[8,1], index: 2, kind: input, shape index: {}]
  %s3 = inlined_call_operand.vmem [shape: bf16[2,8,4], index: 3, kind: output, shape index: {}]
  %s4 = sld [smem:[#allocation0]]
  $region45: #{discriminator_forward.8} parent=0
    _
  %s6 = ssub.s32 1, %s4
  %s7 = scalar_select 0, %s6, %s4
  loop: start=0, step=1, limit=4
  $region2: #{discriminator_forward.8} parent=0 // loop_pre_header
    _
  $region3: #{discriminator_forward.8} parent=0 // loop_header
    %s9 = sphi 0, %s13
    %p10 = scmp.ge.s32.totalorder %s9, 4
    %s16 = sphi 0, %s28
    %s17 = sphi 0, %s24
    %s18 = sphi 0, %s16
    %s19 = sphi 0, %s17
    %s20 = sphi 0, %s18
    %s21 = sphi 0, %s19
    %s33 = sphi 0, %s35
    %s36 = sphi 0, %s33
    %s37 = sphi 0, %s36
    %s53 = sphi 0, %s37
    %s57 = sphi 0, %s57
    %s59 = sphi 0, %s57
    %s60 = sphi 0, %s59
    %s74 = sphi 0, %s60
    %s78 = sphi 0, %s78
    %s80 = sphi 0, %s78
    %s81 = sphi 0, %s80
    %s95 = sphi 0, %s81
    %s103 = sphi 0, %s105
    %s106 = sphi 0, %s103
    %s107 = sphi 0, %s106
    %s123 = sphi 0, %s107
  $region4: #{discriminator_forward.8} parent=0 // loop_header_branch
    %12 = sbr.rel (%p10) target = $region8
  $region5: #{discriminator_forward.8} parent=0 // loop_body
    %s14 = ssub.s32 %s9, 1
    %s15 = ssub.s32 %s9, 2
    %s22 = sadd.s32 1, %s17
    %p23 = scmp.ge.s32.totalorder %s22, 1
    %s24 = scalar_select %p23, 0, %s22
    %s25 = sadd.s32 1, %s16
    %s26 = scalar_select %p23, %s25, %s16
    %p27 = scmp.ge.s32.totalorder %s26, 2
    %s28 = scalar_select %p27, 0, %s26
    %s29 = ssub.s32 %s16, %s28
    %s30 = ssub.s32 %s17, %s24
    %s31 = sor.u32 %s29, %s30
    %p32 = scmp.eq.s32.totalorder %s31, 0
    %s34 = sadd.s32 %s33, 1
    %s35 = scalar_select %p32, %s33, %s34
    %p38 = pneg %p32
    %p39 = scmp.eq.s32.totalorder %s9, 1
    %p40 = por %p38, %p39
    %p41 = scmp.ne.s32.totalorder %s33, %s36
    %p42 = scmp.eq.s32.totalorder %s9, 0
    %p43 = por %p41, %p42
    %p44 = scmp.ne.s32.totalorder %s33, %s36
    %p45 = scmp.eq.s32.totalorder %s14, 1
    %p46 = por %p44, %p45
    %p47 = scmp.ne.s32.totalorder %s36, %s37
    %p48 = scmp.eq.s32.totalorder %s14, 0
    %p49 = por %p47, %p48
    %p50 = scmp.ne.s32.totalorder %s36, %s37
    %p51 = scmp.eq.s32.totalorder %s15, 1
    %p52 = por %p50, %p51
    %p54 = scmp.ne.s32.totalorder %s37, %s53
    %p55 = scmp.eq.s32.totalorder %s15, 0
    %p56 = por %p54, %p55
    %s58 = sadd.s32 %s57, 1
    %p61 = scmp.eq.s32.totalorder %s9, 1
    %p62 = scmp.ne.s32.totalorder %s57, %s59
    %p63 = scmp.eq.s32.totalorder %s9, 0
    %p64 = por %p62, %p63
    %p65 = scmp.ne.s32.totalorder %s57, %s59
    %p66 = scmp.eq.s32.totalorder %s14, 1
    %p67 = por %p65, %p66
    %p68 = scmp.ne.s32.totalorder %s59, %s60
    %p69 = scmp.eq.s32.totalorder %s14, 0
    %p70 = por %p68, %p69
    %p71 = scmp.ne.s32.totalorder %s59, %s60
    %p72 = scmp.eq.s32.totalorder %s15, 1
    %p73 = por %p71, %p72
    %p75 = scmp.ne.s32.totalorder %s60, %s74
    %p76 = scmp.eq.s32.totalorder %s15, 0
    %p77 = por %p75, %p76
    %s79 = sadd.s32 %s78, 1
    %p82 = scmp.eq.s32.totalorder %s9, 1
    %p83 = scmp.ne.s32.totalorder %s78, %s80
    %p84 = scmp.eq.s32.totalorder %s9, 0
    %p85 = por %p83, %p84
    %p86 = scmp.ne.s32.totalorder %s78, %s80
    %p87 = scmp.eq.s32.totalorder %s14, 1
    %p88 = por %p86, %p87
    %p89 = scmp.ne.s32.totalorder %s80, %s81
    %p90 = scmp.eq.s32.totalorder %s14, 0
    %p91 = por %p89, %p90
    %p92 = scmp.ne.s32.totalorder %s80, %s81
    %p93 = scmp.eq.s32.totalorder %s15, 1
    %p94 = por %p92, %p93
    %p96 = scmp.ne.s32.totalorder %s81, %s95
    %p97 = scmp.eq.s32.totalorder %s15, 0
    %p98 = por %p96, %p97
    %s99 = ssub.s32 %s16, %s28
    %s100 = ssub.s32 %s17, %s24
    %s101 = sor.u32 %s99, %s100
    %p102 = scmp.eq.s32.totalorder %s101, 0
    %s104 = sadd.s32 %s103, 1
    %s105 = scalar_select %p102, %s103, %s104
    %p108 = pneg %p102
    %p109 = scmp.eq.s32.totalorder %s9, 1
    %p110 = por %p108, %p109
    %p111 = scmp.ne.s32.totalorder %s103, %s106
    %p112 = scmp.eq.s32.totalorder %s9, 0
    %p113 = por %p111, %p112
    %p114 = scmp.ne.s32.totalorder %s103, %s106
    %p115 = scmp.eq.s32.totalorder %s14, 1
    %p116 = por %p114, %p115
    %p117 = scmp.ne.s32.totalorder %s106, %s107
    %p118 = scmp.eq.s32.totalorder %s14, 0
    %p119 = por %p117, %p118
    %p120 = scmp.ne.s32.totalorder %s106, %s107
    %p121 = scmp.eq.s32.totalorder %s15, 1
    %p122 = por %p120, %p121
    %p124 = scmp.ne.s32.totalorder %s107, %s123
    %p125 = scmp.eq.s32.totalorder %s15, 0
    %p126 = por %p124, %p125
    %p127 = scmp.le.s32.totalorder 1, %s9
    %p128 = scmp.lt.s32.totalorder %s9, 3
    %p129 = pnand %p127, %p128
    %p130 = pneg %p129
    // Predicated region
    $region9: #{discriminator_forward.8} parent=5 // pred_check
      _
    $region10: #{discriminator_forward.8} parent=5 // pred_check_branch
      %132 = sbr.rel (%p129) target = $region12
    $region11: #{discriminator_forward.8} parent=5 // pred_region
      %s133 = ssub.s32 %s9, 1
      // Predicated region
      $region13: #{discriminator_forward.8} parent=11 // pred_check
        %p134 = pneg %p70
      $region14: #{discriminator_forward.8} parent=11 // pred_check_branch
        %136 = sbr.rel (%p134) target = $region16
      $region15: #{discriminator_forward.8} parent=11 // pred_region
        _
      $region16: #{discriminator_forward.8} parent=11 // pred_fallthru
        _
      // Predicated region
      $region17: #{discriminator_forward.8} parent=11 // pred_check
        %p137 = pneg %p91
      $region18: #{discriminator_forward.8} parent=11 // pred_check_branch
        %139 = sbr.rel (%p137) target = $region20
      $region19: #{discriminator_forward.8} parent=11 // pred_region
        _
      $region20: #{discriminator_forward.8} parent=11 // pred_fallthru
        _
    $region12: #{discriminator_forward.8} parent=5 // pred_fallthru
      _
    %p140 = scmp.lt.s32.totalorder %s9, 2
    // Predicated region
    $region21: #{discriminator_forward.8} parent=5 // pred_check
      %p141 = pneg %p140
    $region22: #{discriminator_forward.8} parent=5 // pred_check_branch
      %143 = sbr.rel (%p141) target = $region24
    $region23: #{discriminator_forward.8} parent=5 // pred_region
      // Predicated region
      $region25: #{discriminator_forward.8} parent=23 // pred_check
        %p144 = pneg %p43
      $region26: #{discriminator_forward.8} parent=23 // pred_check_branch
        %146 = sbr.rel (%p144) target = $region28
      $region27: #{discriminator_forward.8} parent=23 // pred_region
        %p147 = scmp.lt.s32.totalorder %s16, 1
        %s148 = scalar_select %p147, %s16, 1
        %p149 = scmp.lt.s32.totalorder %s17, 0
        %s150 = scalar_select %p149, %s17, 0
        %s151 = smul.addr %s148, 36
        %s152 = sadd.s32 %s150, %s151
        %s153 = smul.addr %s152, 4
        %s154 = scalar_lea.vmem %s0, %s153
      $region28: #{discriminator_forward.8} parent=23 // pred_fallthru
        _
    $region24: #{discriminator_forward.8} parent=5 // pred_fallthru
      _
    %p155 = scmp.le.s32.totalorder 1, %s9
    %p156 = scmp.lt.s32.totalorder %s9, 3
    %p157 = pnand %p155, %p156
    %p158 = pneg %p157
    // Predicated region
    $region29: #{discriminator_forward.8} parent=5 // pred_check
      _
    $region30: #{discriminator_forward.8} parent=5 // pred_check_branch
      %160 = sbr.rel (%p157) target = $region32
    $region31: #{discriminator_forward.8} parent=5 // pred_region
      %s161 = ssub.s32 %s9, 1
      %p162 = scmp.lt.s32.totalorder %s18, 1
      %s163 = scalar_select %p162, %s18, 1
      %p164 = scmp.lt.s32.totalorder %s19, 0
      %s165 = scalar_select %p164, %s19, 0
      %s166 = smul.addr %s163, 36
      %s167 = sadd.s32 %s165, %s166
      %s168 = smul.addr %s167, 4
      %s169 = scalar_lea.vmem %s0, %s168
      %p170 = pneg %p49
      %p171 = pneg %p46
      %p172 = pneg %p70
      %p173 = pneg %p67
      %p174 = pneg %p91
      %p175 = pneg %p88
      %p176 = pneg %p119
      %p177 = pneg %p116
      %p178 = scmp.lt.s32.totalorder %s18, 1
      %s179 = scalar_select %p178, %s18, 1
      %p180 = scmp.lt.s32.totalorder %s19, 0
      %s181 = scalar_select %p180, %s19, 0
      %s182 = sadd.s32 %s181, %s179
      %s183 = smul.addr %s182, 4
      %s184 = scalar_lea.vmem %s3, %s183
      %p185 = scmp.lt.s32.totalorder %s18, 1
      %s186 = scalar_select %p185, %s18, 1
      %p187 = scmp.lt.s32.totalorder %s19, 0
      %s188 = scalar_select %p187, %s19, 0
      %s189 = smul.addr %s186, 36
      %s190 = sadd.s32 %s188, %s189
      %s191 = smul.addr %s190, 4
      %s192 = scalar_lea.vmem %s0, %s191
      %p193 = scmp.lt.s32.totalorder %s18, 1
      %s194 = scalar_select %p193, %s18, 1
      %p195 = scmp.lt.s32.totalorder %s19, 0
      %s196 = scalar_select %p195, %s19, 0
      %s197 = sadd.s32 %s196, %s194
      %s198 = smul.addr %s197, 4
      %s199 = scalar_lea.vmem %s3, %s198
      %v201 = vld [vmem:[%s1] sm:$0xff]
      %v202 = vld [vmem:[%s1 + $0x8] sm:$0xf]
      %v203 = vld [vmem:[%s192] sm:$0xf]
      %v204 = vld [vmem:[%s192 + $0x4] sm:$0xf]
      %v205 = vld [vmem:[%s192 + $0x8] sm:$0xf]
      %v206 = vld [vmem:[%s192 + $0xc] sm:$0xf]
      %v207 = vld [vmem:[%s192 + $0x10] sm:$0xf]
      %v208 = vld [vmem:[%s192 + $0x14] sm:$0xf]
      %v209 = vld [vmem:[%s192 + $0x18] sm:$0xf]
      %v210 = vld [vmem:[%s192 + $0x1c] sm:$0xf]
      %v211 = vld [vmem:[%s192 + $0x20] sm:$0xf]
      %v212 = vld [vmem:[%s192 + $0x24] sm:$0xf]
      %v213 = vld [vmem:[%s192 + $0x28] sm:$0xf]
      %v214 = vld [vmem:[%s192 + $0x2c] sm:$0xf]
      %v215 = vld [vmem:[%s192 + $0x30] sm:$0xf]
      %v216 = vld [vmem:[%s192 + $0x34] sm:$0xf]
      %v217 = vld [vmem:[%s192 + $0x38] sm:$0xf]
      %v218 = vld [vmem:[%s192 + $0x3c] sm:$0xf]
      %v219 = vld [vmem:[%s192 + $0x40] sm:$0xf]
      %v220 = vld [vmem:[%s192 + $0x44] sm:$0xf]
      %v221 = vld [vmem:[%s192 + $0x48] sm:$0xf]
      %v222 = vld [vmem:[%s192 + $0x4c] sm:$0xf]
      %v223 = vld [vmem:[%s192 + $0x50] sm:$0xf]
      %v224 = vld [vmem:[%s192 + $0x54] sm:$0xf]
      %v225 = vld [vmem:[%s192 + $0x58] sm:$0xf]
      %v226 = vld [vmem:[%s192 + $0x5c] sm:$0xf]
      %v227 = vld [vmem:[%s192 + $0x60] sm:$0xf]
      %v228 = vld [vmem:[%s192 + $0x64] sm:$0xf]
      %v229 = vld [vmem:[%s192 + $0x68] sm:$0xf]
      %v230 = vld [vmem:[%s192 + $0x6c] sm:$0xf]
      %v231 = vld [vmem:[%s192 + $0x70] sm:$0xf]
      %v232 = vld [vmem:[%s192 + $0x74] sm:$0xf]
      %v233 = vld [vmem:[%s192 + $0x78] sm:$0xf]
      %v234 = vld [vmem:[%s192 + $0x7c] sm:$0xf]
      %v235 = vld [vmem:[%s192 + $0x80] sm:$0xf]
      %v236 = vld [vmem:[%s192 + $0x84] sm:$0xf]
      %v237 = vld [vmem:[%s192 + $0x88] sm:$0xf]
      %v238 = vld [vmem:[%s192 + $0x8c] sm:$0xf]
      %v239 = vld [vmem:[%s2] sm:$0xff]
      %241 = vset.pattern.permute.xlu0 0
      %242 = vperm.xlu0 %241, %v239
      %v243 = vpop.permute.xlu0 %242
      %v247 = vunpack.c.l.b16 %v201
      %v248 = vunpack.c.h.b16 %v201
      %v249 = vunpack.c.l.b16 %v202
      %v250 = vpack.c.b16 %v247, %v247
      %v251 = vpack.c.b16 %v248, %v248
      %v252 = vpack.c.b16 %v249, %v249
      %v291 = vunpack.c.l.b16 %v203
      %v292 = vunpack.c.l.b16 %v204
      %v293 = vunpack.c.l.b16 %v205
      %v294 = vunpack.c.l.b16 %v206
      %v295 = vunpack.c.l.b16 %v207
      %v296 = vunpack.c.l.b16 %v208
      %v297 = vunpack.c.l.b16 %v209
      %v298 = vunpack.c.l.b16 %v210
      %v299 = vunpack.c.l.b16 %v211
      %v300 = vunpack.c.l.b16 %v212
      %v301 = vunpack.c.l.b16 %v213
      %v302 = vunpack.c.l.b16 %v214
      %v303 = vunpack.c.l.b16 %v215
      %v304 = vunpack.c.l.b16 %v216
      %v305 = vunpack.c.l.b16 %v217
      %v306 = vunpack.c.l.b16 %v218
      %v307 = vunpack.c.l.b16 %v219
      %v308 = vunpack.c.l.b16 %v220
      %v309 = vunpack.c.l.b16 %v221
      %v310 = vunpack.c.l.b16 %v222
      %v311 = vunpack.c.l.b16 %v223
      %v312 = vunpack.c.l.b16 %v224
      %v313 = vunpack.c.l.b16 %v225
      %v314 = vunpack.c.l.b16 %v226
      %v315 = vunpack.c.l.b16 %v227
      %v316 = vunpack.c.l.b16 %v228
      %v317 = vunpack.c.l.b16 %v229
      %v318 = vunpack.c.l.b16 %v230
      %v319 = vunpack.c.l.b16 %v231
      %v320 = vunpack.c.l.b16 %v232
      %v321 = vunpack.c.l.b16 %v233
      %v322 = vunpack.c.l.b16 %v234
      %v323 = vunpack.c.l.b16 %v235
      %v324 = vunpack.c.l.b16 %v236
      %v325 = vunpack.c.l.b16 %v237
      %v326 = vunpack.c.l.b16 %v238
      %v327 = vpack.c.b16 %v292, %v291
      %v328 = vpack.c.b16 %v294, %v293
      %v329 = vpack.c.b16 %v296, %v295
      %v330 = vpack.c.b16 %v298, %v297
      %v331 = vpack.c.b16 %v300, %v299
      %v332 = vpack.c.b16 %v302, %v301
      %v333 = vpack.c.b16 %v304, %v303
      %v334 = vpack.c.b16 %v306, %v305
      %v335 = vpack.c.b16 %v308, %v307
      %v336 = vpack.c.b16 %v310, %v309
      %v337 = vpack.c.b16 %v312, %v311
      %v338 = vpack.c.b16 %v314, %v313
      %v339 = vpack.c.b16 %v316, %v315
      %v340 = vpack.c.b16 %v318, %v317
      %v341 = vpack.c.b16 %v320, %v319
      %v342 = vpack.c.b16 %v322, %v321
      %v343 = vpack.c.b16 %v324, %v323
      %v344 = vpack.c.b16 %v326, %v325
      %vm363 = vcmask 261120
      %v365 = vsel %vm363, %v252, 0
      %367 = vmatprep.subr.bf16.mxu0 0
      %368 = vmatpush1.bf16.msra.mxu0 %v327
      %369 = vmatprep.subr.bf16.mxu0 0
      %370 = vmatpush1.bf16.msra.mxu0 %v328
      %371 = vmatprep.subr.bf16.mxu0 0
      %372 = vmatpush1.bf16.msra.mxu0 %v329
      %373 = vmatprep.subr.bf16.mxu0 0
      %374 = vmatpush1.bf16.msra.mxu0 %v330
      %375 = vmatprep.subr.bf16.mxu0 0
      %376 = vmatpush1.bf16.msra.mxu0 %v331
      %377 = vmatprep.subr.bf16.mxu0 0
      %378 = vmatpush1.bf16.msra.mxu0 %v332
      %379 = vmatprep.subr.bf16.mxu0 0
      %380 = vmatpush1.bf16.msra.mxu0 %v333
      %381 = vmatprep.subr.bf16.mxu0 0
      %382 = vmatpush1.bf16.msra.mxu0 %v334
      %383 = vmatprep.subr.bf16.mxu0 0
      %384 = vmatpush1.bf16.msra.mxu0 %v335
      %385 = vmatprep.subr.bf16.mxu0 0
      %386 = vmatpush1.bf16.msra.mxu0 %v336
      %387 = vmatprep.subr.bf16.mxu0 0
      %388 = vmatpush1.bf16.msra.mxu0 %v337
      %389 = vmatprep.subr.bf16.mxu0 0
      %390 = vmatpush1.bf16.msra.mxu0 %v338
      %391 = vmatprep.subr.bf16.mxu0 0
      %392 = vmatpush1.bf16.msra.mxu0 %v339
      %393 = vmatprep.subr.bf16.mxu0 0
      %394 = vmatpush1.bf16.msra.mxu0 %v340
      %395 = vmatprep.subr.bf16.mxu0 0
      %396 = vmatpush1.bf16.msra.mxu0 %v341
      %397 = vmatprep.subr.bf16.mxu0 0
      %398 = vmatpush1.bf16.msra.mxu0 %v342
      %399 = vmatprep.mubr.bf16.mxu0 %v251
      %400 = vmatmul.mubr.bf16.gmra.mrb[0].mxu0 %v250
      %v401 = vpop.f32.mrb[0].mxu0
      %v402 = vadd.f32 %v243, %v401
      %v403 = vpop.f32.mrb[0].mxu0
      %v404 = vpop.f32.mrb[0].mxu0
      %v405 = vpop.f32.mrb[0].mxu0
      %406 = vdwg.mxu0
      %407 = vmatprep.subr.bf16.mxu0 0
      %408 = vmatpush1.bf16.msra.mxu0 %v343
      %409 = vmatprep.subr.bf16.mxu0 0
      %410 = vmatpush1.bf16.msra.mxu0 %v344
      %411 = vmatprep.subr.bf16.mxu0 0
      %412 = vmatpush1.bf16.msra.mxu0 0
      %413 = vmatprep.subr.bf16.mxu0 0
      %414 = vmatpush1.bf16.msra.mxu0 0
      %415 = vmatprep.subr.bf16.mxu0 0
      %416 = vmatpush1.bf16.msra.mxu0 0
      %417 = vmatprep.subr.bf16.mxu0 0
      %418 = vmatpush1.bf16.msra.mxu0 0
      %419 = vmatprep.subr.bf16.mxu0 0
      %420 = vmatpush1.bf16.msra.mxu0 0
      %421 = vmatprep.subr.bf16.mxu0 0
      %422 = vmatpush1.bf16.msra.mxu0 0
      %423 = vmatprep.subr.bf16.mxu0 0
      %424 = vmatpush1.bf16.msra.mxu0 0
      %425 = vmatprep.subr.bf16.mxu0 0
      %426 = vmatpush1.bf16.msra.mxu0 0
      %427 = vmatprep.subr.bf16.mxu0 0
      %428 = vmatpush1.bf16.msra.mxu0 0
      %429 = vmatprep.subr.bf16.mxu0 0
      %430 = vmatpush1.bf16.msra.mxu0 0
      %431 = vmatprep.subr.bf16.mxu0 0
      %432 = vmatpush1.bf16.msra.mxu0 0
      %433 = vmatprep.subr.bf16.mxu0 0
      %434 = vmatpush1.bf16.msra.mxu0 0
      %435 = vmatprep.subr.bf16.mxu0 0
      %436 = vmatpush1.bf16.msra.mxu0 0
      %437 = vmatprep.subr.bf16.mxu0 0
      %438 = vmatpush1.bf16.msra.mxu0 0
      %439 = vmatprep.mubr.bf16.mxu0 0
      %440 = vmatmul.mubr.bf16.gmra.mrb[0].mxu0 %v365
      %v441 = vpop.f32.mrb[0].mxu0
      %v442 = vadd.f32 %v402, %v441
      %v443 = vpop.f32.mrb[0].mxu0
      %v444 = vpop.f32.mrb[0].mxu0
      %v445 = vpop.f32.mrb[0].mxu0
      %446 = vdwg.mxu0
      %vm447 = vcmp.gt.f32.partialorder %v442, 0.0
      %v448 = vmul.f32 %v442, 0.2
      %v449 = vsel %vm447, %v442, %v448
      %v450 = vpack.c.bf16 %v449, %v449
      %vm451 = vcmask 27648
      %452 = vst.msk [vmem:[%s199] sm:$0xf] %vm451, %v450
      %p453 = scmp.lt.s32.totalorder %s18, 1
      %s454 = scalar_select %p453, %s18, 1
      %p455 = scmp.lt.s32.totalorder %s19, 0
      %s456 = scalar_select %p455, %s19, 0
      %s457 = sadd.s32 %s456, %s454
      %s458 = smul.addr %s457, 4
      %s459 = scalar_lea.vmem %s3, %s458
      // Predicated region
      $region33: #{discriminator_forward.8} parent=31 // pred_check
        %p460 = pneg %p116
      $region34: #{discriminator_forward.8} parent=31 // pred_check_branch
        %462 = sbr.rel (%p460) target = $region36
      $region35: #{discriminator_forward.8} parent=31 // pred_region
        _
      $region36: #{discriminator_forward.8} parent=31 // pred_fallthru
        _
    $region32: #{discriminator_forward.8} parent=5 // pred_fallthru
      _
    %p463 = scmp.le.s32.totalorder 2, %s9
    // Predicated region
    $region37: #{discriminator_forward.8} parent=5 // pred_check
      %p464 = pneg %p463
    $region38: #{discriminator_forward.8} parent=5 // pred_check_branch
      %466 = sbr.rel (%p464) target = $region40
    $region39: #{discriminator_forward.8} parent=5 // pred_region
      %s467 = ssub.s32 %s9, 2
      // Predicated region
      $region41: #{discriminator_forward.8} parent=39 // pred_check
        %p468 = pneg %p122
      $region42: #{discriminator_forward.8} parent=39 // pred_check_branch
        %470 = sbr.rel (%p468) target = $region44
      $region43: #{discriminator_forward.8} parent=39 // pred_region
        %p471 = scmp.lt.s32.totalorder %s20, 1
        %s472 = scalar_select %p471, %s20, 1
        %p473 = scmp.lt.s32.totalorder %s21, 0
        %s474 = scalar_select %p473, %s21, 0
        %s475 = sadd.s32 %s474, %s472
        %s476 = smul.addr %s475, 4
        %s477 = scalar_lea.vmem %s3, %s476
      $region44: #{discriminator_forward.8} parent=39 // pred_fallthru
        _
    $region40: #{discriminator_forward.8} parent=5 // pred_fallthru
      _
  $region6: #{discriminator_forward.8} parent=0 // loop_footer
    %s13 = sadd.s32 1, %s9
  $region7: #{discriminator_forward.8} parent=0 // loop_footer_branch
    %8 = sbr.rel target = $region3
  $region8: #{discriminator_forward.8} parent=0 // loop_exit
    _

</llo_original>
